<compile_context>
chip_gen: v5e
topology: v5e:2x2
jax: 0.10.0
libtpu: 0.0.40
codegen_flags: <defaults>
</compile_context>

<pallas_src>
from functools import partial

import numpy as np

import jax
import jax.numpy as jnp
from jax.experimental import pallas as pl
from jax.experimental.pallas import tpu as pltpu


# ------------------------------ fused kernel --------------------------------

def _fused_block_kernel(xcol_ref, w_ref, b_ref, g_ref, bt_ref, o_ref, *,
                        groups, eps, nb):
    """Fused WS-conv3x3 (one deep-K GEMM) + bias + GroupNorm + folded affine
    + SiLU, for `nb` samples per grid step.

    xcol_ref : (nb, Kc, L)  bf16 im2col activations, Kc = KH*KW*Cin, L = H*W
    w_ref    : (O, Kc)      bf16 standardized conv weights
    b_ref    : (O, 1)       f32 conv bias
    g_ref    : (nb, O, 1)   f32 effective gamma = gamma * (scale + 1)
    bt_ref   : (nb, O, 1)   f32 effective beta  = beta * (scale + 1) + shift
    o_ref    : (nb, O, L)   output (lane-dense: L is a multiple of 128)
    """
    O, L = o_ref.shape[1], o_ref.shape[2]
    G = groups
    Cg = O // G
    inv_n = 1.0 / float(Cg * L)

    w = w_ref[...]                                    # (O, Kc) bf16, reused
    bias = b_ref[...]                                 # (O, 1)  f32

    for s in range(nb):                               # static unroll over samples
        # Single deep-K GEMM directly in (O, L) orientation (no transposes),
        # bf16 operands, f32 accumulation.
        y = jnp.dot(w, xcol_ref[s],
                    preferred_element_type=jnp.float32) + bias   # (O, L) f32
        yg = y.reshape(G, Cg, L)                      # free split of major dim

        # GroupNorm stats (biased variance, f32); rsqrt goes to the EUP slot.
        mean = jnp.sum(jnp.sum(yg, axis=2, keepdims=True),
                       axis=1, keepdims=True) * inv_n             # (G, 1, 1)
        d = yg - mean
        var = jnp.sum(jnp.sum(d * d, axis=2, keepdims=True),
                      axis=1, keepdims=True) * inv_n              # (G, 1, 1)

        # normalize + (gamma,beta already folded with scale/shift) in one FMA.
        a = jax.lax.rsqrt(var + eps) * g_ref[s].reshape(G, Cg, 1)
        z = d * a + bt_ref[s].reshape(G, Cg, 1)
        o_ref[s] = (z * jax.nn.sigmoid(z)).reshape(O, L).astype(o_ref.dtype)


# ------------------------- one-time parameter prep ---------------------------

def prepare_block_params(params, *, ws_eps=1e-5, compute_dtype=jnp.bfloat16):
    """Hoisted out of the forward pass: weight standardization + re-layout of
    the conv weights to a (O, KH*KW*Cin) bf16 GEMM matrix (tap-major K)."""
    w = params['w']                                   # (O, Cin, KH, KW)
    O, Cin, KH, KW = w.shape
    wm = jnp.mean(w, axis=(1, 2, 3), keepdims=True)
    wv = jnp.mean((w - wm) ** 2, axis=(1, 2, 3), keepdims=True)
    wn = (w - wm) * jax.lax.rsqrt(wv + ws_eps)
    # (O, Cin, KH, KW) -> (O, KH, KW, Cin) -> (O, KH*KW*Cin): K index
    # (kh*KW + kw)*Cin + c, matching the wrapper-side im2col ordering.
    wmat = wn.transpose(0, 2, 3, 1).reshape(O, KH * KW * Cin).astype(compute_dtype)
    return {
        'wmat': wmat,
        'bias': params['b'].reshape(O, 1).astype(jnp.float32),
        'gamma': params['gamma'].astype(jnp.float32),
        'beta': params['beta'].astype(jnp.float32),
    }


# -------------------------------- forward ------------------------------------

def block_forward(prepared, x, scale_shift=None, *, groups=8, kernel_size=3,
                  samples_per_step=1, compute_dtype=jnp.bfloat16,
                  out_dtype=jnp.bfloat16):
    """PyTorch `Block.forward` semantics: NCHW in -> NCHW out, one pallas_call.

    samples_per_step: fold this many batch samples into one grid step
      (set to B on single-TC v5e/v6e; keep >= 2 grid steps on v7x).
    """
    wmat, bias = prepared['wmat'], prepared['bias']
    gamma, beta = prepared['gamma'], prepared['beta']
    B, Cin, H, W = x.shape
    O, Kc = wmat.shape
    KH = KW = kernel_size
    assert Kc == KH * KW * Cin, (Kc, KH, KW, Cin)
    G = groups
    L = H * W
    ph, pw = KH // 2, KW // 2
    eps = 1e-5                                        # GroupNorm eps (torch default)

    nb = samples_per_step
    assert B % nb == 0, (B, nb)

    # ---- wrapper-side im2col: (B, Cin, H, W) -> (B, KH*KW*Cin, H*W) bf16 ----
    xp = jnp.pad(x, ((0, 0), (0, 0), (ph, ph), (pw, pw))).astype(compute_dtype)
    taps = [xp[:, :, kh:kh + H, kw:kw + W].reshape(B, Cin, L)
            for kh in range(KH) for kw in range(KW)]
    xcol = jnp.concatenate(taps, axis=1)              # (B, Kc, L)

    # ---- fold (scale + 1) / shift into GroupNorm gamma/beta (per sample) ----
    if scale_shift is None:
        g_eff = jnp.broadcast_to(gamma.reshape(1, O, 1), (B, O, 1))
        b_eff = jnp.broadcast_to(beta.reshape(1, O, 1), (B, O, 1))
    else:
        scale, shift = scale_shift                    # (B, O, 1, 1) or (B, O)
        sc = scale.reshape(B, O, 1).astype(jnp.float32)
        sh = shift.reshape(B, O, 1).astype(jnp.float32)
        g_eff = gamma.reshape(1, O, 1) * (sc + 1.0)
        b_eff = beta.reshape(1, O, 1) * (sc + 1.0) + sh

    out_itemsize = np.dtype(out_dtype).itemsize
    cost = pl.CostEstimate(
        flops=2 * B * O * Kc * L + 10 * B * O * L,
        transcendentals=B * O * L,
        bytes_accessed=(B * Kc * L * 2 + O * Kc * 2 + O * 4
                        + 2 * B * O * 4 + B * O * L * out_itemsize),
    )

    out = pl.pallas_call(
        partial(_fused_block_kernel, groups=G, eps=eps, nb=nb),
        out_shape=jax.ShapeDtypeStruct((B, O, L), out_dtype),
        grid=(B // nb,),
        in_specs=[
            pl.BlockSpec((nb, Kc, L), lambda i: (i, 0, 0)),
            pl.BlockSpec((O, Kc), lambda i: (0, 0)),
            pl.BlockSpec((O, 1), lambda i: (0, 0)),
            pl.BlockSpec((nb, O, 1), lambda i: (i, 0, 0)),
            pl.BlockSpec((nb, O, 1), lambda i: (i, 0, 0)),
        ],
        out_specs=pl.BlockSpec((nb, O, L), lambda i: (i, 0, 0)),
        compiler_params=pltpu.CompilerParams(
            dimension_semantics=("parallel",)),
        cost_estimate=cost,
    )(xcol, wmat, bias, g_eff, b_eff)
    return out.reshape(B, O, H, W)


# ------------------------- pure-JAX reference (check) ------------------------

def block_reference(params, x, scale_shift=None, *, groups=8):
    w, b = params['w'], params['b']
    wm = jnp.mean(w, axis=(1, 2, 3), keepdims=True)
    wv = jnp.mean((w - wm) ** 2, axis=(1, 2, 3), keepdims=True)
    wn = (w - wm) * jax.lax.rsqrt(wv + 1e-5)
    y = jax.lax.conv_general_dilated(
        x, wn, window_strides=(1, 1), padding=((1, 1), (1, 1)),
        dimension_numbers=('NCHW', 'OIHW', 'NCHW'))
    y = y + b.reshape(1, -1, 1, 1)
    B, C, H, W = y.shape
    yg = y.reshape(B, groups, C // groups, H * W)
    m = jnp.mean(yg, axis=(2, 3), keepdims=True)
    v = jnp.mean((yg - m) ** 2, axis=(2, 3), keepdims=True)
    yn = ((yg - m) * jax.lax.rsqrt(v + 1e-5)).reshape(B, C, H, W)
    yn = yn * params['gamma'].reshape(1, -1, 1, 1) + params['beta'].reshape(1, -1, 1, 1)
    if scale_shift is not None:
        sc, sh = scale_shift
        yn = yn * (sc + 1.0) + sh
    return yn * jax.nn.sigmoid(yn)


# ---------------------------------- main -------------------------------------

if __name__ == "__main__":
    dim, dim_out, groups = 32, 64, 8
    B, H, W = 2, 16, 16

    key = jax.random.PRNGKey(0)
    kw_, kb, kg, kbt, kx, ksc, ksh = jax.random.split(key, 7)
    params = {
        'w': 0.05 * jax.random.normal(kw_, (dim_out, dim, 3, 3), jnp.float32),
        'b': 0.01 * jax.random.normal(kb, (dim_out,), jnp.float32),
        'gamma': 1.0 + 0.02 * jax.random.normal(kg, (dim_out,), jnp.float32),
        'beta': 0.02 * jax.random.normal(kbt, (dim_out,), jnp.float32),
    }
    x = jax.random.normal(kx, (B, dim, H, W), jnp.float32)
    scale = 0.1 * jax.random.normal(ksc, (B, dim_out, 1, 1), jnp.float32)
    shift = 0.1 * jax.random.normal(ksh, (B, dim_out, 1, 1), jnp.float32)

    # One-time parameter prep (hoisted out of the forward pass).
    prepared = prepare_block_params(params)

    # Default: 1 sample per grid step -> 2 "parallel" steps (both v7x TCs).
    fwd = jax.jit(partial(block_forward, groups=groups))
    # Batch-folded variant (single grid step) -> amortizes per-step overhead
    # on single-TensorCore v5e/v6e.
    fwd_folded = jax.jit(partial(block_forward, groups=groups,
                                 samples_per_step=B))

    out1 = jax.block_until_ready(fwd(prepared, x, (scale, shift)))   # block1 path
    out2 = jax.block_until_ready(fwd(prepared, x, None))             # block2 path
    out3 = jax.block_until_ready(fwd_folded(prepared, x, (scale, shift)))

    ref1 = jax.block_until_ready(block_reference(params, x, (scale, shift),
                                                 groups=groups))
    ref2 = jax.block_until_ready(block_reference(params, x, None, groups=groups))

    assert out1.shape == (B, dim_out, H, W), out1.shape
    assert out2.shape == (B, dim_out, H, W), out2.shape
    assert out3.shape == (B, dim_out, H, W), out3.shape
    for o in (out1, out2, out3):
        assert bool(jnp.all(jnp.isfinite(o.astype(jnp.float32))))

    err1 = float(jnp.max(jnp.abs(out1.astype(jnp.float32) - ref1)))
    err2 = float(jnp.max(jnp.abs(out2.astype(jnp.float32) - ref2)))
    err3 = float(jnp.max(jnp.abs(out3.astype(jnp.float32) - ref1)))
    assert err1 < 6e-2 and err2 < 6e-2 and err3 < 6e-2, (err1, err2, err3)
    print("KERNEL_OK")
</pallas_src>

<mosaic_0001>
module attributes {stable_mosaic.version = 11 : i64} {
  func.func @_fused_block_kernel(%arg0: i32, %arg1: memref<1x288x256xbf16, #tpu.memory_space<vmem>>, %arg2: memref<64x288xbf16, #tpu.memory_space<vmem>>, %arg3: memref<64x1xf32, #tpu.memory_space<vmem>>, %arg4: memref<1x64x1xf32, #tpu.memory_space<vmem>>, %arg5: memref<1x64x1xf32, #tpu.memory_space<vmem>>, %arg6: memref<1x64x256xbf16, #tpu.memory_space<vmem>>) attributes {dimension_semantics = [#tpu.dimension_semantics<parallel>], iteration_bounds = array<i64: 2>, scalar_prefetch = 0 : i64, scratch_operands = 0 : i64, tpu.core_type = #tpu.core_type<tc>, window_params = [{transform_indices = @transform_0, window_bounds = array<i64: 1, 288, 256>}, {pipeline_mode = #tpu.pipeline_mode<synchronous>, transform_indices = @transform_1, window_bounds = array<i64: 64, 288>}, {pipeline_mode = #tpu.pipeline_mode<synchronous>, transform_indices = @transform_2, window_bounds = array<i64: 64, 1>}, {transform_indices = @transform_3, window_bounds = array<i64: 1, 64, 1>}, {transform_indices = @transform_4, window_bounds = array<i64: 1, 64, 1>}, {transform_indices = @transform_5, window_bounds = array<i64: 1, 64, 256>}]} {
    %c0 = arith.constant 0 : index
    %c0_0 = arith.constant 0 : index
    %0 = vector.load %arg2[%c0, %c0_0] : memref<64x288xbf16, #tpu.memory_space<vmem>>, vector<64x288xbf16>
    %c0_1 = arith.constant 0 : index
    %c0_2 = arith.constant 0 : index
    %1 = vector.load %arg3[%c0_1, %c0_2] : memref<64x1xf32, #tpu.memory_space<vmem>>, vector<64x1xf32>
    %c0_3 = arith.constant 0 : index
    %c0_4 = arith.constant 0 : index
    %c0_5 = arith.constant 0 : index
    %2 = vector.load %arg1[%c0_3, %c0_4, %c0_5] : memref<1x288x256xbf16, #tpu.memory_space<vmem>>, vector<1x288x256xbf16>
    %3 = vector.shape_cast %2 : vector<1x288x256xbf16> to vector<288x256xbf16>
    %cst = arith.constant dense<0.000000e+00> : vector<64x256xf32>
    %4 = tpu.matmul %0, %3, %cst {dimension_numbers = #tpu.dot_dimension_numbers<[1], [0], [0], [1], [0, 0, 1, 1], [], []>} : vector<64x288xbf16>, vector<288x256xbf16>, vector<64x256xf32> -> vector<64x256xf32>
    %5 = vector.broadcast %1 : vector<64x1xf32> to vector<64x256xf32>
    %6 = arith.addf %4, %5 : vector<64x256xf32>
    %7 = vector.shape_cast %6 : vector<64x256xf32> to vector<8x8x256xf32>
    %cst_6 = arith.constant dense<0.000000e+00> : vector<8x8xf32>
    %8 = vector.multi_reduction <add>, %7, %cst_6 [2] : vector<8x8x256xf32> to vector<8x8xf32>
    %9 = vector.shape_cast %8 : vector<8x8xf32> to vector<8x8x1xf32>
    %cst_7 = arith.constant dense<0.000000e+00> : vector<8x1xf32>
    %10 = vector.multi_reduction <add>, %9, %cst_7 [1] : vector<8x8x1xf32> to vector<8x1xf32>
    %11 = vector.shape_cast %10 : vector<8x1xf32> to vector<8x1x1xf32>
    %cst_8 = arith.constant 4.8828125E-4 : f32
    %12 = vector.broadcast %cst_8 : f32 to vector<8x1x1xf32>
    %13 = arith.mulf %11, %12 : vector<8x1x1xf32>
    %14 = vector.broadcast %13 : vector<8x1x1xf32> to vector<8x8x256xf32>
    %15 = arith.subf %7, %14 : vector<8x8x256xf32>
    %16 = arith.mulf %15, %15 : vector<8x8x256xf32>
    %cst_9 = arith.constant dense<0.000000e+00> : vector<8x8xf32>
    %17 = vector.multi_reduction <add>, %16, %cst_9 [2] : vector<8x8x256xf32> to vector<8x8xf32>
    %18 = vector.shape_cast %17 : vector<8x8xf32> to vector<8x8x1xf32>
    %cst_10 = arith.constant dense<0.000000e+00> : vector<8x1xf32>
    %19 = vector.multi_reduction <add>, %18, %cst_10 [1] : vector<8x8x1xf32> to vector<8x1xf32>
    %20 = vector.shape_cast %19 : vector<8x1xf32> to vector<8x1x1xf32>
    %cst_11 = arith.constant 4.8828125E-4 : f32
    %21 = vector.broadcast %cst_11 : f32 to vector<8x1x1xf32>
    %22 = arith.mulf %20, %21 : vector<8x1x1xf32>
    %cst_12 = arith.constant 9.99999974E-6 : f32
    %23 = vector.broadcast %cst_12 : f32 to vector<8x1x1xf32>
    %24 = arith.addf %22, %23 : vector<8x1x1xf32>
    %25 = math.rsqrt %24 : vector<8x1x1xf32>
    %c0_13 = arith.constant 0 : index
    %c0_14 = arith.constant 0 : index
    %c0_15 = arith.constant 0 : index
    %26 = vector.load %arg4[%c0_13, %c0_14, %c0_15] : memref<1x64x1xf32, #tpu.memory_space<vmem>>, vector<1x64x1xf32>
    %27 = vector.shape_cast %26 : vector<1x64x1xf32> to vector<64x1xf32>
    %28 = vector.shape_cast %27 : vector<64x1xf32> to vector<8x8x1xf32>
    %29 = vector.broadcast %25 : vector<8x1x1xf32> to vector<8x8x1xf32>
    %30 = arith.mulf %29, %28 : vector<8x8x1xf32>
    %31 = vector.broadcast %30 : vector<8x8x1xf32> to vector<8x8x256xf32>
    %32 = arith.mulf %15, %31 : vector<8x8x256xf32>
    %c0_16 = arith.constant 0 : index
    %c0_17 = arith.constant 0 : index
    %c0_18 = arith.constant 0 : index
    %33 = vector.load %arg5[%c0_16, %c0_17, %c0_18] : memref<1x64x1xf32, #tpu.memory_space<vmem>>, vector<1x64x1xf32>
    %34 = vector.shape_cast %33 : vector<1x64x1xf32> to vector<64x1xf32>
    %35 = vector.shape_cast %34 : vector<64x1xf32> to vector<8x8x1xf32>
    %36 = vector.broadcast %35 : vector<8x8x1xf32> to vector<8x8x256xf32>
    %37 = arith.addf %32, %36 : vector<8x8x256xf32>
    %38 = arith.negf %37 : vector<8x8x256xf32>
    %39 = math.exp %38 : vector<8x8x256xf32>
    %cst_19 = arith.constant 1.000000e+00 : f32
    %40 = vector.broadcast %cst_19 : f32 to vector<8x8x256xf32>
    %41 = arith.addf %40, %39 : vector<8x8x256xf32>
    %42 = arith.divf %40, %41 : vector<8x8x256xf32>
    %43 = arith.mulf %37, %42 : vector<8x8x256xf32>
    %44 = vector.shape_cast %43 : vector<8x8x256xf32> to vector<64x256xf32>
    %45 = arith.truncf %44 : vector<64x256xf32> to vector<64x256xbf16>
    %c0_20 = arith.constant 0 : index
    %c0_21 = arith.constant 0 : index
    %c0_22 = arith.constant 0 : index
    %46 = vector.load %arg6[%c0_20, %c0_21, %c0_22] : memref<1x64x256xbf16, #tpu.memory_space<vmem>>, vector<1x64x256xbf16>
    %47 = vector.shape_cast %46 : vector<1x64x256xbf16> to vector<64x256xbf16>
    %48 = vector.shape_cast %45 : vector<64x256xbf16> to vector<1x64x256xbf16>
    tpu.vector_store %arg6[%c0_20, %c0_21, %c0_22], %48 {strides = array<i32>} : memref<1x64x256xbf16, #tpu.memory_space<vmem>>, vector<1x64x256xbf16>,
    return
  }
  func.func @transform_0(%arg0: i32) -> (i32, i32, i32) {
    %c0_i32 = arith.constant 0 : i32
    %c0_i32_0 = arith.constant 0 : i32
    %c0_i32_1 = arith.constant 0 : i32
    return %arg0, %c0_i32, %c0_i32_0 : i32, i32, i32
  }
  func.func @transform_1(%arg0: i32) -> (i32, i32) {
    %c0_i32 = arith.constant 0 : i32
    %c0_i32_0 = arith.constant 0 : i32
    %c0_i32_1 = arith.constant 0 : i32
    return %c0_i32, %c0_i32_0 : i32, i32
  }
  func.func @transform_2(%arg0: i32) -> (i32, i32) {
    %c0_i32 = arith.constant 0 : i32
    %c0_i32_0 = arith.constant 0 : i32
    %c0_i32_1 = arith.constant 0 : i32
    return %c0_i32, %c0_i32_0 : i32, i32
  }
  func.func @transform_3(%arg0: i32) -> (i32, i32, i32) {
    %c0_i32 = arith.constant 0 : i32
    %c0_i32_0 = arith.constant 0 : i32
    %c0_i32_1 = arith.constant 0 : i32
    return %arg0, %c0_i32, %c0_i32_0 : i32, i32, i32
  }
  func.func @transform_4(%arg0: i32) -> (i32, i32, i32) {
    %c0_i32 = arith.constant 0 : i32
    %c0_i32_0 = arith.constant 0 : i32
    %c0_i32_1 = arith.constant 0 : i32
    return %arg0, %c0_i32, %c0_i32_0 : i32, i32, i32
  }
  func.func @transform_5(%arg0: i32) -> (i32, i32, i32) {
    %c0_i32 = arith.constant 0 : i32
    %c0_i32_0 = arith.constant 0 : i32
    %c0_i32_1 = arith.constant 0 : i32
    return %arg0, %c0_i32, %c0_i32_0 : i32, i32, i32
  }
}

</mosaic_0001>

<llo_original>
// kernel: block_forward.1
$region0: #{block_forward.1}
  #allocation0 [shape = 'u32[]', space=smem, size = 0x4, offset = 0x4, fixed_abs, tag = 'smem constant byte address 0x4 - core index']
  #allocation1 [shape = 'u32[72,128]{1,0:T(1,128)}', space=vmem, size = 0x9000, scoped, tag = 'internal scratch']
  %s0 = inlined_call_operand.vmem [shape: bf16[2,288,256], index: 0, kind: input, shape index: {}]
  %s1 = inlined_call_operand.vmem [shape: bf16[64,288], index: 1, kind: input, shape index: {}]
  %s2 = inlined_call_operand.vmem [shape: f32[64,1], index: 2, kind: input, shape index: {}]
  %s3 = inlined_call_operand.vmem [shape: f32[2,64,1], index: 3, kind: input, shape index: {}]
  %s4 = inlined_call_operand.vmem [shape: f32[2,64,1], index: 4, kind: input, shape index: {}]
  %s5 = inlined_call_operand.vmem [shape: bf16[2,64,256], index: 5, kind: output, shape index: {}]
  %s6 = sld [smem:[#allocation0]]
  $region53: #{block_forward.1} parent=0
    _
  %s8 = ssub.s32 1, %s6
  %s9 = scalar_select 0, %s8, %s6
  loop: start=0, step=1, limit=4
  $region2: #{block_forward.1} parent=0 // loop_pre_header
    _
  $region3: #{block_forward.1} parent=0 // loop_header
    %s11 = sphi 0, %s15
    %p12 = scmp.ge.s32.totalorder %s11, 4
    %s21 = sphi 0, %s23
    %s24 = sphi 0, %s21
    %s25 = sphi 0, %s24
    %s41 = sphi 0, %s25
    %s45 = sphi 0, %s45
    %s47 = sphi 0, %s45
    %s48 = sphi 0, %s47
    %s62 = sphi 0, %s48
    %s66 = sphi 0, %s66
    %s68 = sphi 0, %s66
    %s69 = sphi 0, %s68
    %s83 = sphi 0, %s69
    %s89 = sphi 0, %s91
    %s92 = sphi 0, %s89
    %s93 = sphi 0, %s92
    %s109 = sphi 0, %s93
    %s115 = sphi 0, %s117
    %s118 = sphi 0, %s115
    %s119 = sphi 0, %s118
    %s135 = sphi 0, %s119
    %s141 = sphi 0, %s143
    %s144 = sphi 0, %s141
    %s145 = sphi 0, %s144
    %s161 = sphi 0, %s145
  $region4: #{block_forward.1} parent=0 // loop_header_branch
    %14 = sbr.rel (%p12) target = $region8
  $region5: #{block_forward.1} parent=0 // loop_body
    %s16 = ssub.s32 %s11, 1
    %s17 = ssub.s32 %s11, 2
    %s18 = sadd.s32 %s11, 1
    %s19 = ssub.s32 %s11, %s18
    %p20 = scmp.eq.s32.totalorder %s19, 0
    %s22 = sadd.s32 %s21, 1
    %s23 = scalar_select %p20, %s21, %s22
    %p26 = pneg %p20
    %p27 = scmp.eq.s32.totalorder %s11, 1
    %p28 = por %p26, %p27
    %p29 = scmp.ne.s32.totalorder %s21, %s24
    %p30 = scmp.eq.s32.totalorder %s11, 0
    %p31 = por %p29, %p30
    %p32 = scmp.ne.s32.totalorder %s21, %s24
    %p33 = scmp.eq.s32.totalorder %s16, 1
    %p34 = por %p32, %p33
    %p35 = scmp.ne.s32.totalorder %s24, %s25
    %p36 = scmp.eq.s32.totalorder %s16, 0
    %p37 = por %p35, %p36
    %p38 = scmp.ne.s32.totalorder %s24, %s25
    %p39 = scmp.eq.s32.totalorder %s17, 1
    %p40 = por %p38, %p39
    %p42 = scmp.ne.s32.totalorder %s25, %s41
    %p43 = scmp.eq.s32.totalorder %s17, 0
    %p44 = por %p42, %p43
    %s46 = sadd.s32 %s45, 1
    %p49 = scmp.eq.s32.totalorder %s11, 1
    %p50 = scmp.ne.s32.totalorder %s45, %s47
    %p51 = scmp.eq.s32.totalorder %s11, 0
    %p52 = por %p50, %p51
    %p53 = scmp.ne.s32.totalorder %s45, %s47
    %p54 = scmp.eq.s32.totalorder %s16, 1
    %p55 = por %p53, %p54
    %p56 = scmp.ne.s32.totalorder %s47, %s48
    %p57 = scmp.eq.s32.totalorder %s16, 0
    %p58 = por %p56, %p57
    %p59 = scmp.ne.s32.totalorder %s47, %s48
    %p60 = scmp.eq.s32.totalorder %s17, 1
    %p61 = por %p59, %p60
    %p63 = scmp.ne.s32.totalorder %s48, %s62
    %p64 = scmp.eq.s32.totalorder %s17, 0
    %p65 = por %p63, %p64
    %s67 = sadd.s32 %s66, 1
    %p70 = scmp.eq.s32.totalorder %s11, 1
    %p71 = scmp.ne.s32.totalorder %s66, %s68
    %p72 = scmp.eq.s32.totalorder %s11, 0
    %p73 = por %p71, %p72
    %p74 = scmp.ne.s32.totalorder %s66, %s68
    %p75 = scmp.eq.s32.totalorder %s16, 1
    %p76 = por %p74, %p75
    %p77 = scmp.ne.s32.totalorder %s68, %s69
    %p78 = scmp.eq.s32.totalorder %s16, 0
    %p79 = por %p77, %p78
    %p80 = scmp.ne.s32.totalorder %s68, %s69
    %p81 = scmp.eq.s32.totalorder %s17, 1
    %p82 = por %p80, %p81
    %p84 = scmp.ne.s32.totalorder %s69, %s83
    %p85 = scmp.eq.s32.totalorder %s17, 0
    %p86 = por %p84, %p85
    %s87 = ssub.s32 %s11, %s18
    %p88 = scmp.eq.s32.totalorder %s87, 0
    %s90 = sadd.s32 %s89, 1
    %s91 = scalar_select %p88, %s89, %s90
    %p94 = pneg %p88
    %p95 = scmp.eq.s32.totalorder %s11, 1
    %p96 = por %p94, %p95
    %p97 = scmp.ne.s32.totalorder %s89, %s92
    %p98 = scmp.eq.s32.totalorder %s11, 0
    %p99 = por %p97, %p98
    %p100 = scmp.ne.s32.totalorder %s89, %s92
    %p101 = scmp.eq.s32.totalorder %s16, 1
    %p102 = por %p100, %p101
    %p103 = scmp.ne.s32.totalorder %s92, %s93
    %p104 = scmp.eq.s32.totalorder %s16, 0
    %p105 = por %p103, %p104
    %p106 = scmp.ne.s32.totalorder %s92, %s93
    %p107 = scmp.eq.s32.totalorder %s17, 1
    %p108 = por %p106, %p107
    %p110 = scmp.ne.s32.totalorder %s93, %s109
    %p111 = scmp.eq.s32.totalorder %s17, 0
    %p112 = por %p110, %p111
    %s113 = ssub.s32 %s11, %s18
    %p114 = scmp.eq.s32.totalorder %s113, 0
    %s116 = sadd.s32 %s115, 1
    %s117 = scalar_select %p114, %s115, %s116
    %p120 = pneg %p114
    %p121 = scmp.eq.s32.totalorder %s11, 1
    %p122 = por %p120, %p121
    %p123 = scmp.ne.s32.totalorder %s115, %s118
    %p124 = scmp.eq.s32.totalorder %s11, 0
    %p125 = por %p123, %p124
    %p126 = scmp.ne.s32.totalorder %s115, %s118
    %p127 = scmp.eq.s32.totalorder %s16, 1
    %p128 = por %p126, %p127
    %p129 = scmp.ne.s32.totalorder %s118, %s119
    %p130 = scmp.eq.s32.totalorder %s16, 0
    %p131 = por %p129, %p130
    %p132 = scmp.ne.s32.totalorder %s118, %s119
    %p133 = scmp.eq.s32.totalorder %s17, 1
    %p134 = por %p132, %p133
    %p136 = scmp.ne.s32.totalorder %s119, %s135
    %p137 = scmp.eq.s32.totalorder %s17, 0
    %p138 = por %p136, %p137
    %s139 = ssub.s32 %s11, %s18
    %p140 = scmp.eq.s32.totalorder %s139, 0
    %s142 = sadd.s32 %s141, 1
    %s143 = scalar_select %p140, %s141, %s142
    %p146 = pneg %p140
    %p147 = scmp.eq.s32.totalorder %s11, 1
    %p148 = por %p146, %p147
    %p149 = scmp.ne.s32.totalorder %s141, %s144
    %p150 = scmp.eq.s32.totalorder %s11, 0
    %p151 = por %p149, %p150
    %p152 = scmp.ne.s32.totalorder %s141, %s144
    %p153 = scmp.eq.s32.totalorder %s16, 1
    %p154 = por %p152, %p153
    %p155 = scmp.ne.s32.totalorder %s144, %s145
    %p156 = scmp.eq.s32.totalorder %s16, 0
    %p157 = por %p155, %p156
    %p158 = scmp.ne.s32.totalorder %s144, %s145
    %p159 = scmp.eq.s32.totalorder %s17, 1
    %p160 = por %p158, %p159
    %p162 = scmp.ne.s32.totalorder %s145, %s161
    %p163 = scmp.eq.s32.totalorder %s17, 0
    %p164 = por %p162, %p163
    %p165 = scmp.le.s32.totalorder 1, %s11
    %p166 = scmp.lt.s32.totalorder %s11, 3
    %p167 = pnand %p165, %p166
    %p168 = pneg %p167
    // Predicated region
    $region9: #{block_forward.1} parent=5 // pred_check
      _
    $region10: #{block_forward.1} parent=5 // pred_check_branch
      %170 = sbr.rel (%p167) target = $region12
    $region11: #{block_forward.1} parent=5 // pred_region
      %s171 = ssub.s32 %s11, 1
      // Predicated region
      $region13: #{block_forward.1} parent=11 // pred_check
        %p172 = pneg %p58
      $region14: #{block_forward.1} parent=11 // pred_check_branch
        %174 = sbr.rel (%p172) target = $region16
      $region15: #{block_forward.1} parent=11 // pred_region
        _
      $region16: #{block_forward.1} parent=11 // pred_fallthru
        _
      // Predicated region
      $region17: #{block_forward.1} parent=11 // pred_check
        %p175 = pneg %p79
      $region18: #{block_forward.1} parent=11 // pred_check_branch
        %177 = sbr.rel (%p175) target = $region20
      $region19: #{block_forward.1} parent=11 // pred_region
        _
      $region20: #{block_forward.1} parent=11 // pred_fallthru
        _
    $region12: #{block_forward.1} parent=5 // pred_fallthru
      _
    %p178 = scmp.lt.s32.totalorder %s11, 2
    // Predicated region
    $region21: #{block_forward.1} parent=5 // pred_check
      %p179 = pneg %p178
    $region22: #{block_forward.1} parent=5 // pred_check_branch
      %181 = sbr.rel (%p179) target = $region24
    $region23: #{block_forward.1} parent=5 // pred_region
      // Predicated region
      $region25: #{block_forward.1} parent=23 // pred_check
        %p182 = pneg %p31
      $region26: #{block_forward.1} parent=23 // pred_check_branch
        %184 = sbr.rel (%p182) target = $region28
      $region27: #{block_forward.1} parent=23 // pred_region
        %p185 = scmp.lt.s32.totalorder %s11, 1
        %s186 = scalar_select %p185, %s11, 1
        %s187 = smul.addr %s186, 72
        %s188 = smul.addr %s187, 4
        %s189 = scalar_lea.vmem %s0, %s188
      $region28: #{block_forward.1} parent=23 // pred_fallthru
        _
      // Predicated region
      $region29: #{block_forward.1} parent=23 // pred_check
        %p190 = pneg %p99
      $region30: #{block_forward.1} parent=23 // pred_check_branch
        %192 = sbr.rel (%p190) target = $region32
      $region31: #{block_forward.1} parent=23 // pred_region
        %p193 = scmp.lt.s32.totalorder %s11, 1
        %s194 = scalar_select %p193, %s11, 1
        %s195 = smul.addr %s194, 8
        %s196 = smul.addr %s195, 8
        %s197 = scalar_lea.vmem %s3, %s196
      $region32: #{block_forward.1} parent=23 // pred_fallthru
        _
      // Predicated region
      $region33: #{block_forward.1} parent=23 // pred_check
        %p198 = pneg %p125
      $region34: #{block_forward.1} parent=23 // pred_check_branch
        %200 = sbr.rel (%p198) target = $region36
      $region35: #{block_forward.1} parent=23 // pred_region
        %p201 = scmp.lt.s32.totalorder %s11, 1
        %s202 = scalar_select %p201, %s11, 1
        %s203 = smul.addr %s202, 8
        %s204 = smul.addr %s203, 8
        %s205 = scalar_lea.vmem %s4, %s204
      $region36: #{block_forward.1} parent=23 // pred_fallthru
        _
    $region24: #{block_forward.1} parent=5 // pred_fallthru
      _
    %p206 = scmp.le.s32.totalorder 1, %s11
    %p207 = scmp.lt.s32.totalorder %s11, 3
    %p208 = pnand %p206, %p207
    %p209 = pneg %p208
    // Predicated region
    $region37: #{block_forward.1} parent=5 // pred_check
      _
    $region38: #{block_forward.1} parent=5 // pred_check_branch
      %211 = sbr.rel (%p208) target = $region40
    $region39: #{block_forward.1} parent=5 // pred_region
      %s212 = ssub.s32 %s11, 1
      %p213 = scmp.lt.s32.totalorder %s16, 1
      %s214 = scalar_select %p213, %s16, 1
      %s215 = smul.addr %s214, 72
      %s216 = smul.addr %s215, 4
      %s217 = scalar_lea.vmem %s0, %s216
      %p218 = pneg %p37
      %p219 = pneg %p34
      %p220 = pneg %p58
      %p221 = pneg %p55
      %p222 = pneg %p79
      %p223 = pneg %p76
      %p224 = scmp.lt.s32.totalorder %s16, 1
      %s225 = scalar_select %p224, %s16, 1
      %s226 = smul.addr %s225, 8
      %s227 = smul.addr %s226, 8
      %s228 = scalar_lea.vmem %s3, %s227
      %p229 = pneg %p105
      %p230 = pneg %p102
      %p231 = scmp.lt.s32.totalorder %s16, 1
      %s232 = scalar_select %p231, %s16, 1
      %s233 = smul.addr %s232, 8
      %s234 = smul.addr %s233, 8
      %s235 = scalar_lea.vmem %s4, %s234
      %p236 = pneg %p131
      %p237 = pneg %p128
      %p238 = pneg %p157
      %p239 = pneg %p154
      %p240 = scmp.lt.s32.totalorder %s16, 1
      %s241 = scalar_select %p240, %s16, 1
      %s242 = smul.addr %s241, 16
      %s243 = smul.addr %s242, 4
      %s244 = scalar_lea.vmem %s5, %s243
      %p245 = scmp.lt.s32.totalorder %s16, 1
      %s246 = scalar_select %p245, %s16, 1
      %s247 = smul.addr %s246, 72
      %s248 = smul.addr %s247, 4
      %s249 = scalar_lea.vmem %s0, %s248
      %p250 = scmp.lt.s32.totalorder %s16, 1
      %s251 = scalar_select %p250, %s16, 1
      %s252 = smul.addr %s251, 8
      %s253 = smul.addr %s252, 8
      %s254 = scalar_lea.vmem %s3, %s253
      %p255 = scmp.lt.s32.totalorder %s16, 1
      %s256 = scalar_select %p255, %s16, 1
      %s257 = smul.addr %s256, 8
      %s258 = smul.addr %s257, 8
      %s259 = scalar_lea.vmem %s4, %s258
      %p260 = scmp.lt.s32.totalorder %s16, 1
      %s261 = scalar_select %p260, %s16, 1
      %s262 = smul.addr %s261, 16
      %s263 = smul.addr %s262, 4
      %s264 = scalar_lea.vmem %s5, %s263
      %v266 = vld [vmem:[%s1] sm:$0xff]
      %v267 = vld [vmem:[%s1 + $0x8] sm:$0xf]
      %v268 = vld [vmem:[%s1 + $0xc] sm:$0xff]
      %v269 = vld [vmem:[%s1 + $0x14] sm:$0xf]
      %v270 = vld [vmem:[%s1 + $0x18] sm:$0xff]
      %v271 = vld [vmem:[%s1 + $0x20] sm:$0xf]
      %v272 = vld [vmem:[%s1 + $0x24] sm:$0xff]
      %v273 = vld [vmem:[%s1 + $0x2c] sm:$0xf]
      %v274 = vld [vmem:[%s1 + $0x30] sm:$0xff]
      %v275 = vld [vmem:[%s1 + $0x38] sm:$0xf]
      %v276 = vld [vmem:[%s1 + $0x3c] sm:$0xff]
      %v277 = vld [vmem:[%s1 + $0x44] sm:$0xf]
      %v278 = vld [vmem:[%s1 + $0x48] sm:$0xff]
      %v279 = vld [vmem:[%s1 + $0x50] sm:$0xf]
      %v280 = vld [vmem:[%s1 + $0x54] sm:$0xff]
      %v281 = vld [vmem:[%s1 + $0x5c] sm:$0xf]
      %v282 = vld [vmem:[%s2] sm:$0xff]
      %v283 = vld [vmem:[%s2 + $0x8] sm:$0xff]
      %v284 = vld [vmem:[%s2 + $0x10] sm:$0xff]
      %v285 = vld [vmem:[%s2 + $0x18] sm:$0xff]
      %v286 = vld [vmem:[%s2 + $0x20] sm:$0xff]
      %v287 = vld [vmem:[%s2 + $0x28] sm:$0xff]
      %v288 = vld [vmem:[%s2 + $0x30] sm:$0xff]
      %v289 = vld [vmem:[%s2 + $0x38] sm:$0xff]
      %v290 = vld [vmem:[%s249] sm:$0xff]
      %v291 = vld [vmem:[%s249 + $0x8] sm:$0xff]
      %v292 = vld [vmem:[%s249 + $0x10] sm:$0xff]
      %v293 = vld [vmem:[%s249 + $0x18] sm:$0xff]
      %v294 = vld [vmem:[%s249 + $0x20] sm:$0xff]
      %v295 = vld [vmem:[%s249 + $0x28] sm:$0xff]
      %v296 = vld [vmem:[%s249 + $0x30] sm:$0xff]
      %v297 = vld [vmem:[%s249 + $0x38] sm:$0xff]
      %v298 = vld [vmem:[%s249 + $0x40] sm:$0xff]
      %v299 = vld [vmem:[%s249 + $0x48] sm:$0xff]
      %v300 = vld [vmem:[%s249 + $0x50] sm:$0xff]
      %v301 = vld [vmem:[%s249 + $0x58] sm:$0xff]
      %v302 = vld [vmem:[%s249 + $0x60] sm:$0xff]
      %v303 = vld [vmem:[%s249 + $0x68] sm:$0xff]
      %v304 = vld [vmem:[%s249 + $0x70] sm:$0xff]
      %v305 = vld [vmem:[%s249 + $0x78] sm:$0xff]
      %v306 = vld [vmem:[%s249 + $0x80] sm:$0xff]
      %v307 = vld [vmem:[%s249 + $0x88] sm:$0xff]
      %v308 = vld [vmem:[%s249 + $0x90] sm:$0xff]
      %v309 = vld [vmem:[%s249 + $0x98] sm:$0xff]
      %v310 = vld [vmem:[%s249 + $0xa0] sm:$0xff]
      %v311 = vld [vmem:[%s249 + $0xa8] sm:$0xff]
      %v312 = vld [vmem:[%s249 + $0xb0] sm:$0xff]
      %v313 = vld [vmem:[%s249 + $0xb8] sm:$0xff]
      %v314 = vld [vmem:[%s249 + $0xc0] sm:$0xff]
      %v315 = vld [vmem:[%s249 + $0xc8] sm:$0xff]
      %v316 = vld [vmem:[%s249 + $0xd0] sm:$0xff]
      %v317 = vld [vmem:[%s249 + $0xd8] sm:$0xff]
      %v318 = vld [vmem:[%s249 + $0xe0] sm:$0xff]
      %v319 = vld [vmem:[%s249 + $0xe8] sm:$0xff]
      %v320 = vld [vmem:[%s249 + $0xf0] sm:$0xff]
      %v321 = vld [vmem:[%s249 + $0xf8] sm:$0xff]
      %v322 = vld [vmem:[%s249 + $0x100] sm:$0xff]
      %v323 = vld [vmem:[%s249 + $0x108] sm:$0xff]
      %v324 = vld [vmem:[%s249 + $0x110] sm:$0xff]
      %v325 = vld [vmem:[%s249 + $0x118] sm:$0xff]
      %327 = vset.pattern.permute.xlu0 0
      %328 = vperm.xlu0 %327, %v282
      %v329 = vpop.permute.xlu0 %328
      %332 = vset.pattern.permute.xlu0 0
      %333 = vperm.xlu0 %332, %v283
      %v334 = vpop.permute.xlu0 %333
      %337 = vset.pattern.permute.xlu0 0
      %338 = vperm.xlu0 %337, %v284
      %v339 = vpop.permute.xlu0 %338
      %342 = vset.pattern.permute.xlu0 0
      %343 = vperm.xlu0 %342, %v285
      %v344 = vpop.permute.xlu0 %343
      %347 = vset.pattern.permute.xlu0 0
      %348 = vperm.xlu0 %347, %v286
      %v349 = vpop.permute.xlu0 %348
      %352 = vset.pattern.permute.xlu0 0
      %353 = vperm.xlu0 %352, %v287
      %v354 = vpop.permute.xlu0 %353
      %357 = vset.pattern.permute.xlu0 0
      %358 = vperm.xlu0 %357, %v288
      %v359 = vpop.permute.xlu0 %358
      %362 = vset.pattern.permute.xlu0 0
      %363 = vperm.xlu0 %362, %v289
      %v364 = vpop.permute.xlu0 %363
      %v382 = vunpack.c.l.b16 %v266
      %v383 = vunpack.c.h.b16 %v266
      %v384 = vunpack.c.l.b16 %v267
      %v385 = vunpack.c.l.b16 %v268
      %v386 = vunpack.c.h.b16 %v268
      %v387 = vunpack.c.l.b16 %v269
      %v388 = vunpack.c.l.b16 %v270
      %v389 = vunpack.c.h.b16 %v270
      %v390 = vunpack.c.l.b16 %v271
      %v391 = vunpack.c.l.b16 %v272
      %v392 = vunpack.c.h.b16 %v272
      %v393 = vunpack.c.l.b16 %v273
      %v394 = vunpack.c.l.b16 %v274
      %v395 = vunpack.c.h.b16 %v274
      %v396 = vunpack.c.l.b16 %v275
      %v397 = vunpack.c.l.b16 %v276
      %v398 = vunpack.c.h.b16 %v276
      %v399 = vunpack.c.l.b16 %v277
      %v400 = vunpack.c.l.b16 %v278
      %v401 = vunpack.c.h.b16 %v278
      %v402 = vunpack.c.l.b16 %v279
      %v403 = vunpack.c.l.b16 %v280
      %v404 = vunpack.c.h.b16 %v280
      %v405 = vunpack.c.l.b16 %v281
      %v406 = vpack.c.b16 %v385, %v382
      %v407 = vpack.c.b16 %v386, %v383
      %v408 = vpack.c.b16 %v387, %v384
      %v409 = vpack.c.b16 %v391, %v388
      %v410 = vpack.c.b16 %v392, %v389
      %v411 = vpack.c.b16 %v393, %v390
      %v412 = vpack.c.b16 %v397, %v394
      %v413 = vpack.c.b16 %v398, %v395
      %v414 = vpack.c.b16 %v399, %v396
      %v415 = vpack.c.b16 %v403, %v400
      %v416 = vpack.c.b16 %v404, %v401
      %v417 = vpack.c.b16 %v405, %v402
      %v462 = vunpack.c.l.b16 %v290
      %v463 = vunpack.c.h.b16 %v290
      %v464 = vunpack.c.l.b16 %v291
      %v465 = vunpack.c.h.b16 %v291
      %v466 = vunpack.c.l.b16 %v292
      %v467 = vunpack.c.h.b16 %v292
      %v468 = vunpack.c.l.b16 %v293
      %v469 = vunpack.c.h.b16 %v293
      %v470 = vunpack.c.l.b16 %v294
      %v471 = vunpack.c.h.b16 %v294
      %v472 = vunpack.c.l.b16 %v295
      %v473 = vunpack.c.h.b16 %v295
      %v474 = vunpack.c.l.b16 %v296
      %v475 = vunpack.c.h.b16 %v296
      %v476 = vunpack.c.l.b16 %v297
      %v477 = vunpack.c.h.b16 %v297
      %v478 = vunpack.c.l.b16 %v298
      %v479 = vunpack.c.h.b16 %v298
      %v480 = vunpack.c.l.b16 %v299
      %v481 = vunpack.c.h.b16 %v299
      %v482 = vunpack.c.l.b16 %v300
      %v483 = vunpack.c.h.b16 %v300
      %v484 = vunpack.c.l.b16 %v301
      %v485 = vunpack.c.h.b16 %v301
      %v486 = vunpack.c.l.b16 %v302
      %v487 = vunpack.c.h.b16 %v302
      %v488 = vunpack.c.l.b16 %v303
      %v489 = vunpack.c.h.b16 %v303
      %v490 = vunpack.c.l.b16 %v304
      %v491 = vunpack.c.h.b16 %v304
      %v492 = vunpack.c.l.b16 %v305
      %v493 = vunpack.c.h.b16 %v305
      %v494 = vunpack.c.l.b16 %v306
      %v495 = vunpack.c.h.b16 %v306
      %v496 = vunpack.c.l.b16 %v307
      %v497 = vunpack.c.h.b16 %v307
      %v498 = vunpack.c.l.b16 %v308
      %v499 = vunpack.c.h.b16 %v308
      %v500 = vunpack.c.l.b16 %v309
      %v501 = vunpack.c.h.b16 %v309
      %v502 = vunpack.c.l.b16 %v310
      %v503 = vunpack.c.h.b16 %v310
      %v504 = vunpack.c.l.b16 %v311
      %v505 = vunpack.c.h.b16 %v311
      %v506 = vunpack.c.l.b16 %v312
      %v507 = vunpack.c.h.b16 %v312
      %v508 = vunpack.c.l.b16 %v313
      %v509 = vunpack.c.h.b16 %v313
      %v510 = vunpack.c.l.b16 %v314
      %v511 = vunpack.c.h.b16 %v314
      %v512 = vunpack.c.l.b16 %v315
      %v513 = vunpack.c.h.b16 %v315
      %v514 = vunpack.c.l.b16 %v316
      %v515 = vunpack.c.h.b16 %v316
      %v516 = vunpack.c.l.b16 %v317
      %v517 = vunpack.c.h.b16 %v317
      %v518 = vunpack.c.l.b16 %v318
      %v519 = vunpack.c.h.b16 %v318
      %v520 = vunpack.c.l.b16 %v319
      %v521 = vunpack.c.h.b16 %v319
      %v522 = vunpack.c.l.b16 %v320
      %v523 = vunpack.c.h.b16 %v320
      %v524 = vunpack.c.l.b16 %v321
      %v525 = vunpack.c.h.b16 %v321
      %v526 = vunpack.c.l.b16 %v322
      %v527 = vunpack.c.h.b16 %v322
      %v528 = vunpack.c.l.b16 %v323
      %v529 = vunpack.c.h.b16 %v323
      %v530 = vunpack.c.l.b16 %v324
      %v531 = vunpack.c.h.b16 %v324
      %v532 = vunpack.c.l.b16 %v325
      %v533 = vunpack.c.h.b16 %v325
      %v534 = vpack.c.b16 %v464, %v462
      %v535 = vpack.c.b16 %v465, %v463
      %v536 = vpack.c.b16 %v468, %v466
      %v537 = vpack.c.b16 %v469, %v467
      %v538 = vpack.c.b16 %v472, %v470
      %v539 = vpack.c.b16 %v473, %v471
      %v540 = vpack.c.b16 %v476, %v474
      %v541 = vpack.c.b16 %v477, %v475
      %v542 = vpack.c.b16 %v480, %v478
      %v543 = vpack.c.b16 %v481, %v479
      %v544 = vpack.c.b16 %v484, %v482
      %v545 = vpack.c.b16 %v485, %v483
      %v546 = vpack.c.b16 %v488, %v486
      %v547 = vpack.c.b16 %v489, %v487
      %v548 = vpack.c.b16 %v492, %v490
      %v549 = vpack.c.b16 %v493, %v491
      %v550 = vpack.c.b16 %v496, %v494
      %v551 = vpack.c.b16 %v497, %v495
      %v552 = vpack.c.b16 %v500, %v498
      %v553 = vpack.c.b16 %v501, %v499
      %v554 = vpack.c.b16 %v504, %v502
      %v555 = vpack.c.b16 %v505, %v503
      %v556 = vpack.c.b16 %v508, %v506
      %v557 = vpack.c.b16 %v509, %v507
      %v558 = vpack.c.b16 %v512, %v510
      %v559 = vpack.c.b16 %v513, %v511
      %v560 = vpack.c.b16 %v516, %v514
      %v561 = vpack.c.b16 %v517, %v515
      %v562 = vpack.c.b16 %v520, %v518
      %v563 = vpack.c.b16 %v521, %v519
      %v564 = vpack.c.b16 %v524, %v522
      %v565 = vpack.c.b16 %v525, %v523
      %v566 = vpack.c.b16 %v528, %v526
      %v567 = vpack.c.b16 %v529, %v527
      %v568 = vpack.c.b16 %v532, %v530
      %v569 = vpack.c.b16 %v533, %v531
      %vm606 = vcmask 261120
      %v608 = vsel %vm606, %v408, 0
      %v611 = vsel %vm606, %v411, 0
      %v614 = vsel %vm606, %v414, 0
      %v617 = vsel %vm606, %v417, 0
      %619 = vmatpush.bf16.msra.mxu0 %v548
      %620 = vmatpush.bf16.msra.mxu0 %v546
      %621 = vmatpush.bf16.msra.mxu0 %v544
      %622 = vmatpush.bf16.msra.mxu0 %v542
      %623 = vmatpush.bf16.msra.mxu0 %v540
      %624 = vmatpush.bf16.msra.mxu0 %v538
      %625 = vmatpush.bf16.msra.mxu0 %v536
      %626 = vmatpush.bf16.msra.mxu0 %v534
      %627 = vmatmul.bf16.gmra.mxu0 %v406
      %v628 = vpop.f32.mrf.mxu0
      %v629 = vadd.f32 %v329, %v628
      %v630 = vpop.f32.mrf.mxu0
      %v631 = vadd.f32 %v334, %v630
      %632 = vmatmul.bf16.gmra.mxu0 %v409
      %v633 = vpop.f32.mrf.mxu0
      %v634 = vadd.f32 %v339, %v633
      %v635 = vpop.f32.mrf.mxu0
      %v636 = vadd.f32 %v344, %v635
      %637 = vmatmul.bf16.gmra.mxu0 %v412
      %v638 = vpop.f32.mrf.mxu0
      %v639 = vadd.f32 %v349, %v638
      %v640 = vpop.f32.mrf.mxu0
      %v641 = vadd.f32 %v354, %v640
      %642 = vmatmul.bf16.gmra.mxu0 %v415
      %v643 = vpop.f32.mrf.mxu0
      %v644 = vadd.f32 %v359, %v643
      %v645 = vpop.f32.mrf.mxu0
      %v646 = vadd.f32 %v364, %v645
      %647 = vdwg.mxu0
      %648 = vmatpush.bf16.msra.mxu0 %v564
      %649 = vmatpush.bf16.msra.mxu0 %v562
      %650 = vmatpush.bf16.msra.mxu0 %v560
      %651 = vmatpush.bf16.msra.mxu0 %v558
      %652 = vmatpush.bf16.msra.mxu0 %v556
      %653 = vmatpush.bf16.msra.mxu0 %v554
      %654 = vmatpush.bf16.msra.mxu0 %v552
      %655 = vmatpush.bf16.msra.mxu0 %v550
      %656 = vmatmul.bf16.gmra.mxu0 %v407
      %v657 = vpop.f32.mrf.mxu0
      %v658 = vadd.f32 %v629, %v657
      %v659 = vpop.f32.mrf.mxu0
      %v660 = vadd.f32 %v631, %v659
      %661 = vmatmul.bf16.gmra.mxu0 %v410
      %v662 = vpop.f32.mrf.mxu0
      %v663 = vadd.f32 %v634, %v662
      %v664 = vpop.f32.mrf.mxu0
      %v665 = vadd.f32 %v636, %v664
      %666 = vmatmul.bf16.gmra.mxu0 %v413
      %v667 = vpop.f32.mrf.mxu0
      %v668 = vadd.f32 %v639, %v667
      %v669 = vpop.f32.mrf.mxu0
      %v670 = vadd.f32 %v641, %v669
      %671 = vmatmul.bf16.gmra.mxu0 %v416
      %v672 = vpop.f32.mrf.mxu0
      %v673 = vadd.f32 %v644, %v672
      %v674 = vpop.f32.mrf.mxu0
      %v675 = vadd.f32 %v646, %v674
      %676 = vdwg.mxu0
      %677 = vmatpush.bf16.msra.mxu0 0
      %678 = vmatpush.bf16.msra.mxu0 0
      %679 = vmatpush.bf16.msra.mxu0 0
      %680 = vmatpush.bf16.msra.mxu0 0
      %681 = vmatpush.bf16.msra.mxu0 0
      %682 = vmatpush.bf16.msra.mxu0 0
      %683 = vmatpush.bf16.msra.mxu0 %v568
      %684 = vmatpush.bf16.msra.mxu0 %v566
      %685 = vmatmul.bf16.gmra.mxu0 %v608
      %v686 = vpop.f32.mrf.mxu0
      %v687 = vadd.f32 %v658, %v686
      %v688 = vpop.f32.mrf.mxu0
      %v689 = vadd.f32 %v660, %v688
      %690 = vmatmul.bf16.gmra.mxu0 %v611
      %v691 = vpop.f32.mrf.mxu0
      %v692 = vadd.f32 %v663, %v691
      %v693 = vpop.f32.mrf.mxu0
      %v694 = vadd.f32 %v665, %v693
      %695 = vmatmul.bf16.gmra.mxu0 %v614
      %v696 = vpop.f32.mrf.mxu0
      %v697 = vadd.f32 %v668, %v696
      %v698 = vpop.f32.mrf.mxu0
      %v699 = vadd.f32 %v670, %v698
      %700 = vmatmul.bf16.gmra.mxu0 %v617
      %v701 = vpop.f32.mrf.mxu0
      %v702 = vadd.f32 %v673, %v701
      %v703 = vpop.f32.mrf.mxu0
      %v704 = vadd.f32 %v675, %v703
      %705 = vdwg.mxu0
      %706 = vmatpush.bf16.msra.mxu0 %v549
      %707 = vmatpush.bf16.msra.mxu0 %v547
      %708 = vmatpush.bf16.msra.mxu0 %v545
      %709 = vmatpush.bf16.msra.mxu0 %v543
      %710 = vmatpush.bf16.msra.mxu0 %v541
      %711 = vmatpush.bf16.msra.mxu0 %v539
      %712 = vmatpush.bf16.msra.mxu0 %v537
      %713 = vmatpush.bf16.msra.mxu0 %v535
      %714 = vmatmul.bf16.gmra.mxu0 %v406
      %v715 = vpop.f32.mrf.mxu0
      %v716 = vadd.f32 %v329, %v715
      %v717 = vpop.f32.mrf.mxu0
      %v718 = vadd.f32 %v334, %v717
      %719 = vmatmul.bf16.gmra.mxu0 %v409
      %v720 = vpop.f32.mrf.mxu0
      %v721 = vadd.f32 %v339, %v720
      %v722 = vpop.f32.mrf.mxu0
      %v723 = vadd.f32 %v344, %v722
      %724 = vmatmul.bf16.gmra.mxu0 %v412
      %v725 = vpop.f32.mrf.mxu0
      %v726 = vadd.f32 %v349, %v725
      %v727 = vpop.f32.mrf.mxu0
      %v728 = vadd.f32 %v354, %v727
      %729 = vmatmul.bf16.gmra.mxu0 %v415
      %v730 = vpop.f32.mrf.mxu0
      %v731 = vadd.f32 %v359, %v730
      %v732 = vpop.f32.mrf.mxu0
      %v733 = vadd.f32 %v364, %v732
      %734 = vdwg.mxu0
      %735 = vmatpush.bf16.msra.mxu0 %v565
      %736 = vmatpush.bf16.msra.mxu0 %v563
      %737 = vmatpush.bf16.msra.mxu0 %v561
      %738 = vmatpush.bf16.msra.mxu0 %v559
      %739 = vmatpush.bf16.msra.mxu0 %v557
      %740 = vmatpush.bf16.msra.mxu0 %v555
      %741 = vmatpush.bf16.msra.mxu0 %v553
      %742 = vmatpush.bf16.msra.mxu0 %v551
      %743 = vmatmul.bf16.gmra.mxu0 %v407
      %v744 = vpop.f32.mrf.mxu0
      %v745 = vadd.f32 %v716, %v744
      %v746 = vpop.f32.mrf.mxu0
      %v747 = vadd.f32 %v718, %v746
      %748 = vmatmul.bf16.gmra.mxu0 %v410
      %v749 = vpop.f32.mrf.mxu0
      %v750 = vadd.f32 %v721, %v749
      %v751 = vpop.f32.mrf.mxu0
      %v752 = vadd.f32 %v723, %v751
      %753 = vmatmul.bf16.gmra.mxu0 %v413
      %v754 = vpop.f32.mrf.mxu0
      %v755 = vadd.f32 %v726, %v754
      %v756 = vpop.f32.mrf.mxu0
      %v757 = vadd.f32 %v728, %v756
      %758 = vmatmul.bf16.gmra.mxu0 %v416
      %v759 = vpop.f32.mrf.mxu0
      %v760 = vadd.f32 %v731, %v759
      %v761 = vpop.f32.mrf.mxu0
      %v762 = vadd.f32 %v733, %v761
      %763 = vdwg.mxu0
      %764 = vmatpush.bf16.msra.mxu0 0
      %765 = vmatpush.bf16.msra.mxu0 0
      %766 = vmatpush.bf16.msra.mxu0 0
      %767 = vmatpush.bf16.msra.mxu0 0
      %768 = vmatpush.bf16.msra.mxu0 0
      %769 = vmatpush.bf16.msra.mxu0 0
      %770 = vmatpush.bf16.msra.mxu0 %v569
      %771 = vmatpush.bf16.msra.mxu0 %v567
      %772 = vmatmul.bf16.gmra.mxu0 %v608
      %v773 = vpop.f32.mrf.mxu0
      %v774 = vadd.f32 %v745, %v773
      %v775 = vpop.f32.mrf.mxu0
      %v776 = vadd.f32 %v747, %v775
      %777 = vmatmul.bf16.gmra.mxu0 %v611
      %v778 = vpop.f32.mrf.mxu0
      %v779 = vadd.f32 %v750, %v778
      %v780 = vpop.f32.mrf.mxu0
      %v781 = vadd.f32 %v752, %v780
      %782 = vmatmul.bf16.gmra.mxu0 %v614
      %v783 = vpop.f32.mrf.mxu0
      %v784 = vadd.f32 %v755, %v783
      %v785 = vpop.f32.mrf.mxu0
      %v786 = vadd.f32 %v757, %v785
      %787 = vmatmul.bf16.gmra.mxu0 %v617
      %v788 = vpop.f32.mrf.mxu0
      %v789 = vadd.f32 %v760, %v788
      %v790 = vpop.f32.mrf.mxu0
      %v791 = vadd.f32 %v762, %v790
      %792 = vdwg.mxu0
      %v793 = vadd.f32 %v687, %v774
      %794 = vadd.xlane.f32.xlu0 %v793
      %v795 = vpop.xlane.xlu0 %794
      %v796 = vadd.f32 %v689, %v776
      %797 = vadd.xlane.f32.xlu0 %v796
      %v798 = vpop.xlane.xlu0 %797
      %v799 = vadd.f32 %v692, %v779
      %800 = vadd.xlane.f32.xlu0 %v799
      %v801 = vpop.xlane.xlu0 %800
      %v802 = vadd.f32 %v694, %v781
      %803 = vadd.xlane.f32.xlu0 %v802
      %v804 = vpop.xlane.xlu0 %803
      %v805 = vadd.f32 %v697, %v784
      %806 = vadd.xlane.f32.xlu0 %v805
      %v807 = vpop.xlane.xlu0 %806
      %v808 = vadd.f32 %v699, %v786
      %809 = vadd.xlane.f32.xlu0 %v808
      %v810 = vpop.xlane.xlu0 %809
      %v811 = vadd.f32 %v702, %v789
      %812 = vadd.xlane.f32.xlu0 %v811
      %v813 = vpop.xlane.xlu0 %812
      %v814 = vadd.f32 %v704, %v791
      %815 = vadd.xlane.f32.xlu0 %v814
      %v816 = vpop.xlane.xlu0 %815
      %v817 = vrot.slane %v795, 4
      %v818 = vadd.f32 %v795, %v817
      %v819 = vrot.slane %v818, 2
      %v820 = vadd.f32 %v818, %v819
      %v821 = vrot.slane %v820, 1
      %v822 = vadd.f32 %v820, %v821
      %v823 = vrot.slane %v798, 4
      %v824 = vadd.f32 %v798, %v823
      %v825 = vrot.slane %v824, 2
      %v826 = vadd.f32 %v824, %v825
      %v827 = vrot.slane %v826, 1
      %v828 = vadd.f32 %v826, %v827
      %v829 = vrot.slane %v801, 4
      %v830 = vadd.f32 %v801, %v829
      %v831 = vrot.slane %v830, 2
      %v832 = vadd.f32 %v830, %v831
      %v833 = vrot.slane %v832, 1
      %v834 = vadd.f32 %v832, %v833
      %v835 = vrot.slane %v804, 4
      %v836 = vadd.f32 %v804, %v835
      %v837 = vrot.slane %v836, 2
      %v838 = vadd.f32 %v836, %v837
      %v839 = vrot.slane %v838, 1
      %v840 = vadd.f32 %v838, %v839
      %v841 = vrot.slane %v807, 4
      %v842 = vadd.f32 %v807, %v841
      %v843 = vrot.slane %v842, 2
      %v844 = vadd.f32 %v842, %v843
      %v845 = vrot.slane %v844, 1
      %v846 = vadd.f32 %v844, %v845
      %v847 = vrot.slane %v810, 4
      %v848 = vadd.f32 %v810, %v847
      %v849 = vrot.slane %v848, 2
      %v850 = vadd.f32 %v848, %v849
      %v851 = vrot.slane %v850, 1
      %v852 = vadd.f32 %v850, %v851
      %v853 = vrot.slane %v813, 4
      %v854 = vadd.f32 %v813, %v853
      %v855 = vrot.slane %v854, 2
      %v856 = vadd.f32 %v854, %v855
      %v857 = vrot.slane %v856, 1
      %v858 = vadd.f32 %v856, %v857
      %v859 = vrot.slane %v816, 4
      %v860 = vadd.f32 %v816, %v859
      %v861 = vrot.slane %v860, 2
      %v862 = vadd.f32 %v860, %v861
      %v863 = vrot.slane %v862, 1
      %v864 = vadd.f32 %v862, %v863
      %v865 = vmul.f32 %v822, 0.00048828125
      %v866 = vmul.f32 %v828, 0.00048828125
      %v867 = vmul.f32 %v834, 0.00048828125
      %v868 = vmul.f32 %v840, 0.00048828125
      %v869 = vmul.f32 %v846, 0.00048828125
      %v870 = vmul.f32 %v852, 0.00048828125
      %v871 = vmul.f32 %v858, 0.00048828125
      %v872 = vmul.f32 %v864, 0.00048828125
      %v873 = vsub.f32 %v687, %v865
      %v874 = vsub.f32 %v774, %v865
      %v875 = vsub.f32 %v689, %v866
      %v876 = vsub.f32 %v776, %v866
      %v877 = vsub.f32 %v692, %v867
      %v878 = vsub.f32 %v779, %v867
      %v879 = vsub.f32 %v694, %v868
      %v880 = vsub.f32 %v781, %v868
      %v881 = vsub.f32 %v697, %v869
      %v882 = vsub.f32 %v784, %v869
      %v883 = vsub.f32 %v699, %v870
      %v884 = vsub.f32 %v786, %v870
      %v885 = vsub.f32 %v702, %v871
      %v886 = vsub.f32 %v789, %v871
      %v887 = vsub.f32 %v704, %v872
      %v888 = vsub.f32 %v791, %v872
      %v889 = vmul.f32 %v873, %v873
      %v890 = vmul.f32 %v874, %v874
      %v891 = vmul.f32 %v875, %v875
      %v892 = vmul.f32 %v876, %v876
      %v893 = vmul.f32 %v877, %v877
      %v894 = vmul.f32 %v878, %v878
      %v895 = vmul.f32 %v879, %v879
      %v896 = vmul.f32 %v880, %v880
      %v897 = vmul.f32 %v881, %v881
      %v898 = vmul.f32 %v882, %v882
      %v899 = vmul.f32 %v883, %v883
      %v900 = vmul.f32 %v884, %v884
      %v901 = vmul.f32 %v885, %v885
      %v902 = vmul.f32 %v886, %v886
      %v903 = vmul.f32 %v887, %v887
      %v904 = vmul.f32 %v888, %v888
      %v905 = vadd.f32 %v889, %v890
      %906 = vadd.xlane.f32.xlu0 %v905
      %v907 = vpop.xlane.xlu0 %906
      %v908 = vadd.f32 %v891, %v892
      %909 = vadd.xlane.f32.xlu0 %v908
      %v910 = vpop.xlane.xlu0 %909
      %v911 = vadd.f32 %v893, %v894
      %912 = vadd.xlane.f32.xlu0 %v911
      %v913 = vpop.xlane.xlu0 %912
      %v914 = vadd.f32 %v895, %v896
      %915 = vadd.xlane.f32.xlu0 %v914
      %v916 = vpop.xlane.xlu0 %915
      %v917 = vadd.f32 %v897, %v898
      %918 = vadd.xlane.f32.xlu0 %v917
      %v919 = vpop.xlane.xlu0 %918
      %v920 = vadd.f32 %v899, %v900
      %921 = vadd.xlane.f32.xlu0 %v920
      %v922 = vpop.xlane.xlu0 %921
      %v923 = vadd.f32 %v901, %v902
      %924 = vadd.xlane.f32.xlu0 %v923
      %v925 = vpop.xlane.xlu0 %924
      %v926 = vadd.f32 %v903, %v904
      %927 = vadd.xlane.f32.xlu0 %v926
      %v928 = vpop.xlane.xlu0 %927
      %v929 = vrot.slane %v907, 4
      %v930 = vadd.f32 %v907, %v929
      %v931 = vrot.slane %v930, 2
      %v932 = vadd.f32 %v930, %v931
      %v933 = vrot.slane %v932, 1
      %v934 = vadd.f32 %v932, %v933
      %v935 = vrot.slane %v910, 4
      %v936 = vadd.f32 %v910, %v935
      %v937 = vrot.slane %v936, 2
      %v938 = vadd.f32 %v936, %v937
      %v939 = vrot.slane %v938, 1
      %v940 = vadd.f32 %v938, %v939
      %v941 = vrot.slane %v913, 4
      %v942 = vadd.f32 %v913, %v941
      %v943 = vrot.slane %v942, 2
      %v944 = vadd.f32 %v942, %v943
      %v945 = vrot.slane %v944, 1
      %v946 = vadd.f32 %v944, %v945
      %v947 = vrot.slane %v916, 4
      %v948 = vadd.f32 %v916, %v947
      %v949 = vrot.slane %v948, 2
      %v950 = vadd.f32 %v948, %v949
      %v951 = vrot.slane %v950, 1
      %v952 = vadd.f32 %v950, %v951
      %v953 = vrot.slane %v919, 4
      %v954 = vadd.f32 %v919, %v953
      %v955 = vrot.slane %v954, 2
      %v956 = vadd.f32 %v954, %v955
      %v957 = vrot.slane %v956, 1
      %v958 = vadd.f32 %v956, %v957
      %v959 = vrot.slane %v922, 4
      %v960 = vadd.f32 %v922, %v959
      %v961 = vrot.slane %v960, 2
      %v962 = vadd.f32 %v960, %v961
      %v963 = vrot.slane %v962, 1
      %v964 = vadd.f32 %v962, %v963
      %v965 = vrot.slane %v925, 4
      %v966 = vadd.f32 %v925, %v965
      %v967 = vrot.slane %v966, 2
      %v968 = vadd.f32 %v966, %v967
      %v969 = vrot.slane %v968, 1
      %v970 = vadd.f32 %v968, %v969
      %v971 = vrot.slane %v928, 4
      %v972 = vadd.f32 %v928, %v971
      %v973 = vrot.slane %v972, 2
      %v974 = vadd.f32 %v972, %v973
      %v975 = vrot.slane %v974, 1
      %v976 = vadd.f32 %v974, %v975
      %v977 = vmul.f32 %v934, 0.00048828125
      %v978 = vmul.f32 %v940, 0.00048828125
      %v979 = vmul.f32 %v946, 0.00048828125
      %v980 = vmul.f32 %v952, 0.00048828125
      %v981 = vmul.f32 %v958, 0.00048828125
      %v982 = vmul.f32 %v964, 0.00048828125
      %v983 = vmul.f32 %v970, 0.00048828125
      %v984 = vmul.f32 %v976, 0.00048828125
      %v985 = vadd.f32 %v977, 1e-05
      %v986 = vadd.f32 %v978, 1e-05
      %v987 = vadd.f32 %v979, 1e-05
      %v988 = vadd.f32 %v980, 1e-05
      %v989 = vadd.f32 %v981, 1e-05
      %v990 = vadd.f32 %v982, 1e-05
      %v991 = vadd.f32 %v983, 1e-05
      %v992 = vadd.f32 %v984, 1e-05
      %v993 = vrsqrt.pop %v985
      %v994 = vmul.f32 %v993, %v985
      %v995 = vmul.f32 %v994, %v993
      %v996 = vmul.f32 0.5, %v995
      %v997 = vsub.f32 1.5, %v996
      %v998 = vmul.f32 %v993, %v997
      %vm999 = vweird.f32 %v985
      %vm1000 = vweird.f32 %v993
      %vm1001 = vmor %vm999, %vm1000
      %v1002 = vsel %vm1001, %v993, %v998
      %v1003 = vrsqrt.pop %v986
      %v1004 = vmul.f32 %v1003, %v986
      %v1005 = vmul.f32 %v1004, %v1003
      %v1006 = vmul.f32 0.5, %v1005
      %v1007 = vsub.f32 1.5, %v1006
      %v1008 = vmul.f32 %v1003, %v1007
      %vm1009 = vweird.f32 %v986
      %vm1010 = vweird.f32 %v1003
      %vm1011 = vmor %vm1009, %vm1010
      %v1012 = vsel %vm1011, %v1003, %v1008
      %v1013 = vrsqrt.pop %v987
      %v1014 = vmul.f32 %v1013, %v987
      %v1015 = vmul.f32 %v1014, %v1013
      %v1016 = vmul.f32 0.5, %v1015
      %v1017 = vsub.f32 1.5, %v1016
      %v1018 = vmul.f32 %v1013, %v1017
      %vm1019 = vweird.f32 %v987
      %vm1020 = vweird.f32 %v1013
      %vm1021 = vmor %vm1019, %vm1020
      %v1022 = vsel %vm1021, %v1013, %v1018
      %v1023 = vrsqrt.pop %v988
      %v1024 = vmul.f32 %v1023, %v988
      %v1025 = vmul.f32 %v1024, %v1023
      %v1026 = vmul.f32 0.5, %v1025
      %v1027 = vsub.f32 1.5, %v1026
      %v1028 = vmul.f32 %v1023, %v1027
      %vm1029 = vweird.f32 %v988
      %vm1030 = vweird.f32 %v1023
      %vm1031 = vmor %vm1029, %vm1030
      %v1032 = vsel %vm1031, %v1023, %v1028
      %v1033 = vrsqrt.pop %v989
      %v1034 = vmul.f32 %v1033, %v989
      %v1035 = vmul.f32 %v1034, %v1033
      %v1036 = vmul.f32 0.5, %v1035
      %v1037 = vsub.f32 1.5, %v1036
      %v1038 = vmul.f32 %v1033, %v1037
      %vm1039 = vweird.f32 %v989
      %vm1040 = vweird.f32 %v1033
      %vm1041 = vmor %vm1039, %vm1040
      %v1042 = vsel %vm1041, %v1033, %v1038
      %v1043 = vrsqrt.pop %v990
      %v1044 = vmul.f32 %v1043, %v990
      %v1045 = vmul.f32 %v1044, %v1043
      %v1046 = vmul.f32 0.5, %v1045
      %v1047 = vsub.f32 1.5, %v1046
      %v1048 = vmul.f32 %v1043, %v1047
      %vm1049 = vweird.f32 %v990
      %vm1050 = vweird.f32 %v1043
      %vm1051 = vmor %vm1049, %vm1050
      %v1052 = vsel %vm1051, %v1043, %v1048
      %v1053 = vrsqrt.pop %v991
      %v1054 = vmul.f32 %v1053, %v991
      %v1055 = vmul.f32 %v1054, %v1053
      %v1056 = vmul.f32 0.5, %v1055
      %v1057 = vsub.f32 1.5, %v1056
      %v1058 = vmul.f32 %v1053, %v1057
      %vm1059 = vweird.f32 %v991
      %vm1060 = vweird.f32 %v1053
      %vm1061 = vmor %vm1059, %vm1060
      %v1062 = vsel %vm1061, %v1053, %v1058
      %v1063 = vrsqrt.pop %v992
      %v1064 = vmul.f32 %v1063, %v992
      %v1065 = vmul.f32 %v1064, %v1063
      %v1066 = vmul.f32 0.5, %v1065
      %v1067 = vsub.f32 1.5, %v1066
      %v1068 = vmul.f32 %v1063, %v1067
      %vm1069 = vweird.f32 %v992
      %vm1070 = vweird.f32 %v1063
      %vm1071 = vmor %vm1069, %vm1070
      %v1072 = vsel %vm1071, %v1063, %v1068
      %v1073 = vld [vmem:[%s254] sm:$0xff]
      %v1074 = vld [vmem:[%s254 + $0x8] sm:$0xff]
      %v1075 = vld [vmem:[%s254 + $0x10] sm:$0xff]
      %v1076 = vld [vmem:[%s254 + $0x18] sm:$0xff]
      %v1077 = vld [vmem:[%s254 + $0x20] sm:$0xff]
      %v1078 = vld [vmem:[%s254 + $0x28] sm:$0xff]
      %v1079 = vld [vmem:[%s254 + $0x30] sm:$0xff]
      %v1080 = vld [vmem:[%s254 + $0x38] sm:$0xff]
      %v1081 = vmul.f32 %v1002, %v1073
      %v1082 = vmul.f32 %v1012, %v1074
      %v1083 = vmul.f32 %v1022, %v1075
      %v1084 = vmul.f32 %v1032, %v1076
      %v1085 = vmul.f32 %v1042, %v1077
      %v1086 = vmul.f32 %v1052, %v1078
      %v1087 = vmul.f32 %v1062, %v1079
      %v1088 = vmul.f32 %v1072, %v1080
      %1090 = vset.pattern.permute.xlu0 0
      %1091 = vperm.xlu0 %1090, %v1081
      %v1092 = vpop.permute.xlu0 %1091
      %1095 = vset.pattern.permute.xlu0 0
      %1096 = vperm.xlu0 %1095, %v1082
      %v1097 = vpop.permute.xlu0 %1096
      %1100 = vset.pattern.permute.xlu0 0
      %1101 = vperm.xlu0 %1100, %v1083
      %v1102 = vpop.permute.xlu0 %1101
      %1105 = vset.pattern.permute.xlu0 0
      %1106 = vperm.xlu0 %1105, %v1084
      %v1107 = vpop.permute.xlu0 %1106
      %1110 = vset.pattern.permute.xlu0 0
      %1111 = vperm.xlu0 %1110, %v1085
      %v1112 = vpop.permute.xlu0 %1111
      %1115 = vset.pattern.permute.xlu0 0
      %1116 = vperm.xlu0 %1115, %v1086
      %v1117 = vpop.permute.xlu0 %1116
      %1120 = vset.pattern.permute.xlu0 0
      %1121 = vperm.xlu0 %1120, %v1087
      %v1122 = vpop.permute.xlu0 %1121
      %1125 = vset.pattern.permute.xlu0 0
      %1126 = vperm.xlu0 %1125, %v1088
      %v1127 = vpop.permute.xlu0 %1126
      %v1129 = vmul.f32 %v873, %v1092
      %v1130 = vmul.f32 %v874, %v1092
      %v1131 = vmul.f32 %v875, %v1097
      %v1132 = vmul.f32 %v876, %v1097
      %v1133 = vmul.f32 %v877, %v1102
      %v1134 = vmul.f32 %v878, %v1102
      %v1135 = vmul.f32 %v879, %v1107
      %v1136 = vmul.f32 %v880, %v1107
      %v1137 = vmul.f32 %v881, %v1112
      %v1138 = vmul.f32 %v882, %v1112
      %v1139 = vmul.f32 %v883, %v1117
      %v1140 = vmul.f32 %v884, %v1117
      %v1141 = vmul.f32 %v885, %v1122
      %v1142 = vmul.f32 %v886, %v1122
      %v1143 = vmul.f32 %v887, %v1127
      %v1144 = vmul.f32 %v888, %v1127
      %v1145 = vld [vmem:[%s259] sm:$0xff]
      %v1146 = vld [vmem:[%s259 + $0x8] sm:$0xff]
      %v1147 = vld [vmem:[%s259 + $0x10] sm:$0xff]
      %v1148 = vld [vmem:[%s259 + $0x18] sm:$0xff]
      %v1149 = vld [vmem:[%s259 + $0x20] sm:$0xff]
      %v1150 = vld [vmem:[%s259 + $0x28] sm:$0xff]
      %v1151 = vld [vmem:[%s259 + $0x30] sm:$0xff]
      %v1152 = vld [vmem:[%s259 + $0x38] sm:$0xff]
      %1154 = vset.pattern.permute.xlu0 0
      %1155 = vperm.xlu0 %1154, %v1145
      %v1156 = vpop.permute.xlu0 %1155
      %1159 = vset.pattern.permute.xlu0 0
      %1160 = vperm.xlu0 %1159, %v1146
      %v1161 = vpop.permute.xlu0 %1160
      %1164 = vset.pattern.permute.xlu0 0
      %1165 = vperm.xlu0 %1164, %v1147
      %v1166 = vpop.permute.xlu0 %1165
      %1169 = vset.pattern.permute.xlu0 0
      %1170 = vperm.xlu0 %1169, %v1148
      %v1171 = vpop.permute.xlu0 %1170
      %1174 = vset.pattern.permute.xlu0 0
      %1175 = vperm.xlu0 %1174, %v1149
      %v1176 = vpop.permute.xlu0 %1175
      %1179 = vset.pattern.permute.xlu0 0
      %1180 = vperm.xlu0 %1179, %v1150
      %v1181 = vpop.permute.xlu0 %1180
      %1184 = vset.pattern.permute.xlu0 0
      %1185 = vperm.xlu0 %1184, %v1151
      %v1186 = vpop.permute.xlu0 %1185
      %1189 = vset.pattern.permute.xlu0 0
      %1190 = vperm.xlu0 %1189, %v1152
      %v1191 = vpop.permute.xlu0 %1190
      %v1193 = vadd.f32 %v1129, %v1156
      %v1194 = vadd.f32 %v1130, %v1156
      %v1195 = vadd.f32 %v1131, %v1161
      %v1196 = vadd.f32 %v1132, %v1161
      %v1197 = vadd.f32 %v1133, %v1166
      %v1198 = vadd.f32 %v1134, %v1166
      %v1199 = vadd.f32 %v1135, %v1171
      %v1200 = vadd.f32 %v1136, %v1171
      %v1201 = vadd.f32 %v1137, %v1176
      %v1202 = vadd.f32 %v1138, %v1176
      %v1203 = vadd.f32 %v1139, %v1181
      %v1204 = vadd.f32 %v1140, %v1181
      %v1205 = vadd.f32 %v1141, %v1186
      %v1206 = vadd.f32 %v1142, %v1186
      %v1207 = vadd.f32 %v1143, %v1191
      %v1208 = vadd.f32 %v1144, %v1191
      %v1209 = vxor.u32 %v1193, 2147483648
      %v1210 = vxor.u32 %v1194, 2147483648
      %v1211 = vxor.u32 %v1195, 2147483648
      %v1212 = vxor.u32 %v1196, 2147483648
      %v1213 = vxor.u32 %v1197, 2147483648
      %v1214 = vxor.u32 %v1198, 2147483648
      %v1215 = vxor.u32 %v1199, 2147483648
      %v1216 = vxor.u32 %v1200, 2147483648
      %v1217 = vxor.u32 %v1201, 2147483648
      %v1218 = vxor.u32 %v1202, 2147483648
      %v1219 = vxor.u32 %v1203, 2147483648
      %v1220 = vxor.u32 %v1204, 2147483648
      %v1221 = vxor.u32 %v1205, 2147483648
      %v1222 = vxor.u32 %v1206, 2147483648
      %v1223 = vxor.u32 %v1207, 2147483648
      %v1224 = vxor.u32 %v1208, 2147483648
      %v1225 = vmul.f32 %v1209, 1.442695
      %v1226 = vpow.pop %v1225
      %v1227 = vmul.f32 %v1210, 1.442695
      %v1228 = vpow.pop %v1227
      %v1229 = vmul.f32 %v1211, 1.442695
      %v1230 = vpow.pop %v1229
      %v1231 = vmul.f32 %v1212, 1.442695
      %v1232 = vpow.pop %v1231
      %v1233 = vmul.f32 %v1213, 1.442695
      %v1234 = vpow.pop %v1233
      %v1235 = vmul.f32 %v1214, 1.442695
      %v1236 = vpow.pop %v1235
      %v1237 = vmul.f32 %v1215, 1.442695
      %v1238 = vpow.pop %v1237
      %v1239 = vmul.f32 %v1216, 1.442695
      %v1240 = vpow.pop %v1239
      %v1241 = vmul.f32 %v1217, 1.442695
      %v1242 = vpow.pop %v1241
      %v1243 = vmul.f32 %v1218, 1.442695
      %v1244 = vpow.pop %v1243
      %v1245 = vmul.f32 %v1219, 1.442695
      %v1246 = vpow.pop %v1245
      %v1247 = vmul.f32 %v1220, 1.442695
      %v1248 = vpow.pop %v1247
      %v1249 = vmul.f32 %v1221, 1.442695
      %v1250 = vpow.pop %v1249
      %v1251 = vmul.f32 %v1222, 1.442695
      %v1252 = vpow.pop %v1251
      %v1253 = vmul.f32 %v1223, 1.442695
      %v1254 = vpow.pop %v1253
      %v1255 = vmul.f32 %v1224, 1.442695
      %v1256 = vpow.pop %v1255
      %v1257 = vadd.f32 %v1226, 1.0
      %v1258 = vadd.f32 %v1228, 1.0
      %v1259 = vadd.f32 %v1230, 1.0
      %v1260 = vadd.f32 %v1232, 1.0
      %v1261 = vadd.f32 %v1234, 1.0
      %v1262 = vadd.f32 %v1236, 1.0
      %v1263 = vadd.f32 %v1238, 1.0
      %v1264 = vadd.f32 %v1240, 1.0
      %v1265 = vadd.f32 %v1242, 1.0
      %v1266 = vadd.f32 %v1244, 1.0
      %v1267 = vadd.f32 %v1246, 1.0
      %v1268 = vadd.f32 %v1248, 1.0
      %v1269 = vadd.f32 %v1250, 1.0
      %v1270 = vadd.f32 %v1252, 1.0
      %v1271 = vadd.f32 %v1254, 1.0
      %v1272 = vadd.f32 %v1256, 1.0
      %v1273 = vrcp.pop %v1257
      %v1274 = vmul.f32 %v1257, %v1273
      %v1275 = vsub.f32 1.0, %v1274
      %v1276 = vmul.f32 %v1273, %v1275
      %v1277 = vadd.f32 %v1273, %v1276
      %vm1278 = vweird.f32 %v1257
      %vm1279 = vweird.f32 %v1273
      %vm1280 = vmor %vm1278, %vm1279
      %v1281 = vsel %vm1280, %v1273, %v1277
      %v1282 = vand.u32 2147483647, %v1257
      %vm1283 = vcmp.eq.f32.partialorder %v1282, 8.507059e+37
      %v1284 = vand.u32 %v1257, 2147483648
      %v1285 = vor.u32 1.1754944e-38, %v1284
      %v1286 = vsel %vm1283, %v1285, %v1281
      %v1287 = vmul.f32 1.0, %v1286
      %v1288 = vrcp.pop %v1258
      %v1289 = vmul.f32 %v1258, %v1288
      %v1290 = vsub.f32 1.0, %v1289
      %v1291 = vmul.f32 %v1288, %v1290
      %v1292 = vadd.f32 %v1288, %v1291
      %vm1293 = vweird.f32 %v1258
      %vm1294 = vweird.f32 %v1288
      %vm1295 = vmor %vm1293, %vm1294
      %v1296 = vsel %vm1295, %v1288, %v1292
      %v1297 = vand.u32 2147483647, %v1258
      %vm1298 = vcmp.eq.f32.partialorder %v1297, 8.507059e+37
      %v1299 = vand.u32 %v1258, 2147483648
      %v1300 = vor.u32 1.1754944e-38, %v1299
      %v1301 = vsel %vm1298, %v1300, %v1296
      %v1302 = vmul.f32 1.0, %v1301
      %v1303 = vrcp.pop %v1259
      %v1304 = vmul.f32 %v1259, %v1303
      %v1305 = vsub.f32 1.0, %v1304
      %v1306 = vmul.f32 %v1303, %v1305
      %v1307 = vadd.f32 %v1303, %v1306
      %vm1308 = vweird.f32 %v1259
      %vm1309 = vweird.f32 %v1303
      %vm1310 = vmor %vm1308, %vm1309
      %v1311 = vsel %vm1310, %v1303, %v1307
      %v1312 = vand.u32 2147483647, %v1259
      %vm1313 = vcmp.eq.f32.partialorder %v1312, 8.507059e+37
      %v1314 = vand.u32 %v1259, 2147483648
      %v1315 = vor.u32 1.1754944e-38, %v1314
      %v1316 = vsel %vm1313, %v1315, %v1311
      %v1317 = vmul.f32 1.0, %v1316
      %v1318 = vrcp.pop %v1260
      %v1319 = vmul.f32 %v1260, %v1318
      %v1320 = vsub.f32 1.0, %v1319
      %v1321 = vmul.f32 %v1318, %v1320
      %v1322 = vadd.f32 %v1318, %v1321
      %vm1323 = vweird.f32 %v1260
      %vm1324 = vweird.f32 %v1318
      %vm1325 = vmor %vm1323, %vm1324
      %v1326 = vsel %vm1325, %v1318, %v1322
      %v1327 = vand.u32 2147483647, %v1260
      %vm1328 = vcmp.eq.f32.partialorder %v1327, 8.507059e+37
      %v1329 = vand.u32 %v1260, 2147483648
      %v1330 = vor.u32 1.1754944e-38, %v1329
      %v1331 = vsel %vm1328, %v1330, %v1326
      %v1332 = vmul.f32 1.0, %v1331
      %v1333 = vrcp.pop %v1261
      %v1334 = vmul.f32 %v1261, %v1333
      %v1335 = vsub.f32 1.0, %v1334
      %v1336 = vmul.f32 %v1333, %v1335
      %v1337 = vadd.f32 %v1333, %v1336
      %vm1338 = vweird.f32 %v1261
      %vm1339 = vweird.f32 %v1333
      %vm1340 = vmor %vm1338, %vm1339
      %v1341 = vsel %vm1340, %v1333, %v1337
      %v1342 = vand.u32 2147483647, %v1261
      %vm1343 = vcmp.eq.f32.partialorder %v1342, 8.507059e+37
      %v1344 = vand.u32 %v1261, 2147483648
      %v1345 = vor.u32 1.1754944e-38, %v1344
      %v1346 = vsel %vm1343, %v1345, %v1341
      %v1347 = vmul.f32 1.0, %v1346
      %v1348 = vrcp.pop %v1262
      %v1349 = vmul.f32 %v1262, %v1348
      %v1350 = vsub.f32 1.0, %v1349
      %v1351 = vmul.f32 %v1348, %v1350
      %v1352 = vadd.f32 %v1348, %v1351
      %vm1353 = vweird.f32 %v1262
      %vm1354 = vweird.f32 %v1348
      %vm1355 = vmor %vm1353, %vm1354
      %v1356 = vsel %vm1355, %v1348, %v1352
      %v1357 = vand.u32 2147483647, %v1262
      %vm1358 = vcmp.eq.f32.partialorder %v1357, 8.507059e+37
      %v1359 = vand.u32 %v1262, 2147483648
      %v1360 = vor.u32 1.1754944e-38, %v1359
      %v1361 = vsel %vm1358, %v1360, %v1356
      %v1362 = vmul.f32 1.0, %v1361
      %v1363 = vrcp.pop %v1263
      %v1364 = vmul.f32 %v1263, %v1363
      %v1365 = vsub.f32 1.0, %v1364
      %v1366 = vmul.f32 %v1363, %v1365
      %v1367 = vadd.f32 %v1363, %v1366
      %vm1368 = vweird.f32 %v1263
      %vm1369 = vweird.f32 %v1363
      %vm1370 = vmor %vm1368, %vm1369
      %v1371 = vsel %vm1370, %v1363, %v1367
      %v1372 = vand.u32 2147483647, %v1263
      %vm1373 = vcmp.eq.f32.partialorder %v1372, 8.507059e+37
      %v1374 = vand.u32 %v1263, 2147483648
      %v1375 = vor.u32 1.1754944e-38, %v1374
      %v1376 = vsel %vm1373, %v1375, %v1371
      %v1377 = vmul.f32 1.0, %v1376
      %v1378 = vrcp.pop %v1264
      %v1379 = vmul.f32 %v1264, %v1378
      %v1380 = vsub.f32 1.0, %v1379
      %v1381 = vmul.f32 %v1378, %v1380
      %v1382 = vadd.f32 %v1378, %v1381
      %vm1383 = vweird.f32 %v1264
      %vm1384 = vweird.f32 %v1378
      %vm1385 = vmor %vm1383, %vm1384
      %v1386 = vsel %vm1385, %v1378, %v1382
      %v1387 = vand.u32 2147483647, %v1264
      %vm1388 = vcmp.eq.f32.partialorder %v1387, 8.507059e+37
      %v1389 = vand.u32 %v1264, 2147483648
      %v1390 = vor.u32 1.1754944e-38, %v1389
      %v1391 = vsel %vm1388, %v1390, %v1386
      %v1392 = vmul.f32 1.0, %v1391
      %v1393 = vrcp.pop %v1265
      %v1394 = vmul.f32 %v1265, %v1393
      %v1395 = vsub.f32 1.0, %v1394
      %v1396 = vmul.f32 %v1393, %v1395
      %v1397 = vadd.f32 %v1393, %v1396
      %vm1398 = vweird.f32 %v1265
      %vm1399 = vweird.f32 %v1393
      %vm1400 = vmor %vm1398, %vm1399
      %v1401 = vsel %vm1400, %v1393, %v1397
      %v1402 = vand.u32 2147483647, %v1265
      %vm1403 = vcmp.eq.f32.partialorder %v1402, 8.507059e+37
      %v1404 = vand.u32 %v1265, 2147483648
      %v1405 = vor.u32 1.1754944e-38, %v1404
      %v1406 = vsel %vm1403, %v1405, %v1401
      %v1407 = vmul.f32 1.0, %v1406
      %v1408 = vrcp.pop %v1266
      %v1409 = vmul.f32 %v1266, %v1408
      %v1410 = vsub.f32 1.0, %v1409
      %v1411 = vmul.f32 %v1408, %v1410
      %v1412 = vadd.f32 %v1408, %v1411
      %vm1413 = vweird.f32 %v1266
      %vm1414 = vweird.f32 %v1408
      %vm1415 = vmor %vm1413, %vm1414
      %v1416 = vsel %vm1415, %v1408, %v1412
      %v1417 = vand.u32 2147483647, %v1266
      %vm1418 = vcmp.eq.f32.partialorder %v1417, 8.507059e+37
      %v1419 = vand.u32 %v1266, 2147483648
      %v1420 = vor.u32 1.1754944e-38, %v1419
      %v1421 = vsel %vm1418, %v1420, %v1416
      %v1422 = vmul.f32 1.0, %v1421
      %v1423 = vrcp.pop %v1267
      %v1424 = vmul.f32 %v1267, %v1423
      %v1425 = vsub.f32 1.0, %v1424
      %v1426 = vmul.f32 %v1423, %v1425
      %v1427 = vadd.f32 %v1423, %v1426
      %vm1428 = vweird.f32 %v1267
      %vm1429 = vweird.f32 %v1423
      %vm1430 = vmor %vm1428, %vm1429
      %v1431 = vsel %vm1430, %v1423, %v1427
      %v1432 = vand.u32 2147483647, %v1267
      %vm1433 = vcmp.eq.f32.partialorder %v1432, 8.507059e+37
      %v1434 = vand.u32 %v1267, 2147483648
      %v1435 = vor.u32 1.1754944e-38, %v1434
      %v1436 = vsel %vm1433, %v1435, %v1431
      %v1437 = vmul.f32 1.0, %v1436
      %v1438 = vrcp.pop %v1268
      %v1439 = vmul.f32 %v1268, %v1438
      %v1440 = vsub.f32 1.0, %v1439
      %v1441 = vmul.f32 %v1438, %v1440
      %v1442 = vadd.f32 %v1438, %v1441
      %vm1443 = vweird.f32 %v1268
      %vm1444 = vweird.f32 %v1438
      %vm1445 = vmor %vm1443, %vm1444
      %v1446 = vsel %vm1445, %v1438, %v1442
      %v1447 = vand.u32 2147483647, %v1268
      %vm1448 = vcmp.eq.f32.partialorder %v1447, 8.507059e+37
      %v1449 = vand.u32 %v1268, 2147483648
      %v1450 = vor.u32 1.1754944e-38, %v1449
      %v1451 = vsel %vm1448, %v1450, %v1446
      %v1452 = vmul.f32 1.0, %v1451
      %v1453 = vrcp.pop %v1269
      %v1454 = vmul.f32 %v1269, %v1453
      %v1455 = vsub.f32 1.0, %v1454
      %v1456 = vmul.f32 %v1453, %v1455
      %v1457 = vadd.f32 %v1453, %v1456
      %vm1458 = vweird.f32 %v1269
      %vm1459 = vweird.f32 %v1453
      %vm1460 = vmor %vm1458, %vm1459
      %v1461 = vsel %vm1460, %v1453, %v1457
      %v1462 = vand.u32 2147483647, %v1269
      %vm1463 = vcmp.eq.f32.partialorder %v1462, 8.507059e+37
      %v1464 = vand.u32 %v1269, 2147483648
      %v1465 = vor.u32 1.1754944e-38, %v1464
      %v1466 = vsel %vm1463, %v1465, %v1461
      %v1467 = vmul.f32 1.0, %v1466
      %v1468 = vrcp.pop %v1270
      %v1469 = vmul.f32 %v1270, %v1468
      %v1470 = vsub.f32 1.0, %v1469
      %v1471 = vmul.f32 %v1468, %v1470
      %v1472 = vadd.f32 %v1468, %v1471
      %vm1473 = vweird.f32 %v1270
      %vm1474 = vweird.f32 %v1468
      %vm1475 = vmor %vm1473, %vm1474
      %v1476 = vsel %vm1475, %v1468, %v1472
      %v1477 = vand.u32 2147483647, %v1270
      %vm1478 = vcmp.eq.f32.partialorder %v1477, 8.507059e+37
      %v1479 = vand.u32 %v1270, 2147483648
      %v1480 = vor.u32 1.1754944e-38, %v1479
      %v1481 = vsel %vm1478, %v1480, %v1476
      %v1482 = vmul.f32 1.0, %v1481
      %v1483 = vrcp.pop %v1271
      %v1484 = vmul.f32 %v1271, %v1483
      %v1485 = vsub.f32 1.0, %v1484
      %v1486 = vmul.f32 %v1483, %v1485
      %v1487 = vadd.f32 %v1483, %v1486
      %vm1488 = vweird.f32 %v1271
      %vm1489 = vweird.f32 %v1483
      %vm1490 = vmor %vm1488, %vm1489
      %v1491 = vsel %vm1490, %v1483, %v1487
      %v1492 = vand.u32 2147483647, %v1271
      %vm1493 = vcmp.eq.f32.partialorder %v1492, 8.507059e+37
      %v1494 = vand.u32 %v1271, 2147483648
      %v1495 = vor.u32 1.1754944e-38, %v1494
      %v1496 = vsel %vm1493, %v1495, %v1491
      %v1497 = vmul.f32 1.0, %v1496
      %v1498 = vrcp.pop %v1272
      %v1499 = vmul.f32 %v1272, %v1498
      %v1500 = vsub.f32 1.0, %v1499
      %v1501 = vmul.f32 %v1498, %v1500
      %v1502 = vadd.f32 %v1498, %v1501
      %vm1503 = vweird.f32 %v1272
      %vm1504 = vweird.f32 %v1498
      %vm1505 = vmor %vm1503, %vm1504
      %v1506 = vsel %vm1505, %v1498, %v1502
      %v1507 = vand.u32 2147483647, %v1272
      %vm1508 = vcmp.eq.f32.partialorder %v1507, 8.507059e+37
      %v1509 = vand.u32 %v1272, 2147483648
      %v1510 = vor.u32 1.1754944e-38, %v1509
      %v1511 = vsel %vm1508, %v1510, %v1506
      %v1512 = vmul.f32 1.0, %v1511
      %v1513 = vmul.f32 %v1193, %v1287
      %v1514 = vmul.f32 %v1194, %v1302
      %v1515 = vmul.f32 %v1195, %v1317
      %v1516 = vmul.f32 %v1196, %v1332
      %v1517 = vmul.f32 %v1197, %v1347
      %v1518 = vmul.f32 %v1198, %v1362
      %v1519 = vmul.f32 %v1199, %v1377
      %v1520 = vmul.f32 %v1200, %v1392
      %v1521 = vmul.f32 %v1201, %v1407
      %v1522 = vmul.f32 %v1202, %v1422
      %v1523 = vmul.f32 %v1203, %v1437
      %v1524 = vmul.f32 %v1204, %v1452
      %v1525 = vmul.f32 %v1205, %v1467
      %v1526 = vmul.f32 %v1206, %v1482
      %v1527 = vmul.f32 %v1207, %v1497
      %v1528 = vmul.f32 %v1208, %v1512
      %v1529 = vpack.c.bf16 %v1514, %v1513
      %v1530 = vpack.c.bf16 %v1516, %v1515
      %v1531 = vpack.c.bf16 %v1518, %v1517
      %v1532 = vpack.c.bf16 %v1520, %v1519
      %v1533 = vpack.c.bf16 %v1522, %v1521
      %v1534 = vpack.c.bf16 %v1524, %v1523
      %v1535 = vpack.c.bf16 %v1526, %v1525
      %v1536 = vpack.c.bf16 %v1528, %v1527
      %1537 = vst [vmem:[%s264] sm:$0xff] %v1529
      %1538 = vst [vmem:[%s264 + $0x8] sm:$0xff] %v1530
      %1539 = vst [vmem:[%s264 + $0x10] sm:$0xff] %v1531
      %1540 = vst [vmem:[%s264 + $0x18] sm:$0xff] %v1532
      %1541 = vst [vmem:[%s264 + $0x20] sm:$0xff] %v1533
      %1542 = vst [vmem:[%s264 + $0x28] sm:$0xff] %v1534
      %1543 = vst [vmem:[%s264 + $0x30] sm:$0xff] %v1535
      %1544 = vst [vmem:[%s264 + $0x38] sm:$0xff] %v1536
      %p1545 = scmp.lt.s32.totalorder %s16, 1
      %s1546 = scalar_select %p1545, %s16, 1
      %s1547 = smul.addr %s1546, 16
      %s1548 = smul.addr %s1547, 4
      %s1549 = scalar_lea.vmem %s5, %s1548
      // Predicated region
      $region41: #{block_forward.1} parent=39 // pred_check
        %p1550 = pneg %p154
      $region42: #{block_forward.1} parent=39 // pred_check_branch
        %1552 = sbr.rel (%p1550) target = $region44
      $region43: #{block_forward.1} parent=39 // pred_region
        _
      $region44: #{block_forward.1} parent=39 // pred_fallthru
        _
    $region40: #{block_forward.1} parent=5 // pred_fallthru
      _
    %p1553 = scmp.le.s32.totalorder 2, %s11
    // Predicated region
    $region45: #{block_forward.1} parent=5 // pred_check
      %p1554 = pneg %p1553
    $region46: #{block_forward.1} parent=5 // pred_check_branch
      %1556 = sbr.rel (%p1554) target = $region48
    $region47: #{block_forward.1} parent=5 // pred_region
      %s1557 = ssub.s32 %s11, 2
      // Predicated region
      $region49: #{block_forward.1} parent=47 // pred_check
        %p1558 = pneg %p160
      $region50: #{block_forward.1} parent=47 // pred_check_branch
        %1560 = sbr.rel (%p1558) target = $region52
      $region51: #{block_forward.1} parent=47 // pred_region
        %p1561 = scmp.lt.s32.totalorder %s17, 1
        %s1562 = scalar_select %p1561, %s17, 1
        %s1563 = smul.addr %s1562, 16
        %s1564 = smul.addr %s1563, 4
        %s1565 = scalar_lea.vmem %s5, %s1564
      $region52: #{block_forward.1} parent=47 // pred_fallthru
        _
    $region48: #{block_forward.1} parent=5 // pred_fallthru
      _
  $region6: #{block_forward.1} parent=0 // loop_footer
    %s15 = sadd.s32 1, %s11
  $region7: #{block_forward.1} parent=0 // loop_footer_branch
    %10 = sbr.rel target = $region3
  $region8: #{block_forward.1} parent=0 // loop_exit
    _

</llo_original>
